<compile_context>
chip_gen: v6e
topology: v6e:2x2x1
jax: 0.10.0
libtpu: 0.0.40
codegen_flags: <defaults>
</compile_context>

<pallas_src>
import functools

import numpy as np
import jax
import jax.numpy as jnp
from jax.experimental import pallas as pl
from jax.experimental.pallas import tpu as pltpu

EPS = 1e-5


# ----------------------------------------------------------------------------
# Pallas kernel: one grid step == one batch element
# ----------------------------------------------------------------------------
def _tks_kernel(xs_ref, x1_ref, x2_ref, wbig_ref, u_ref,
                fc1wT_ref, fc1s_ref, fc1b_ref, fc2w_ref,
                wscale_ref, wshift_ref,
                out1_ref, out2_ref, *, C, L1):
    f32 = jnp.float32

    # Both temporal convs as a single MXU matmul, f32 accumulation.
    y = jnp.dot(wbig_ref[...], xs_ref[...], preferred_element_type=f32)  # [2C, T*S]
    y1 = y[:C]
    y2 = y[C:]

    # SK gate: global average pool -> fc1 + BN + ReLU -> fc2 -> softmax(2).
    u = jnp.mean(y1 + y2, axis=1, keepdims=True)                  # [C, 1]
    s_pre = jnp.sum(fc1wT_ref[...] * u, axis=0, keepdims=True)    # [1, d]
    s = jnp.maximum(s_pre * fc1s_ref[...] + fc1b_ref[...], 0.0)   # [1, d]
    ab = jnp.sum(fc2w_ref[...] * s, axis=1, keepdims=True)        # [2C, 1]
    a1 = ab[:C]
    a2 = ab[C:]
    m = jnp.maximum(a1, a2)
    e1 = jnp.exp(a1 - m)
    e2 = jnp.exp(a2 - m)
    inv = pl.reciprocal(e1 + e2, approx=True)        # EUP slot, nearly free

    # Fold the BN(W) per-channel scale into the gate vectors (it commutes with
    # the nearest-neighbour upsample), avoiding a full-tile VPU multiply.
    ws = wscale_ref[...]                                           # [C, 1]
    g1 = (e1 * inv) * ws
    g2 = (e2 * inv) * ws
    zs = (g1 * y1 + g2 * y2).astype(jnp.bfloat16)                  # [C, T*S]

    # Fused epilogue: frame-select + kxk nearest upsample of BOTH streams as a
    # single lane-dense matmul, then BN shift + residual add (all in VMEM).
    up = jnp.dot(zs, u_ref[...], preferred_element_type=f32)       # [C, L1+L2]
    wsh = wshift_ref[...]                                          # [C, 1]
    out1_ref[...] = up[:, :L1] + wsh + x1_ref[...]
    out2_ref[...] = up[:, L1:] + wsh + x2_ref[...]


def _tks_pallas(xs, x1f, x2f, wbig, u_mat, fc1wT, fc1s, fc1b, fc2w,
                wscale, wshift, *, B, C, d, L1, L2, TTS):
    L = L1 + L2
    kern = functools.partial(_tks_kernel, C=C, L1=L1)

    # Advisory cost hint so XLA schedules neighbouring ops around this call.
    flops = B * (2 * (2 * C) * (5 * C) * TTS + 2 * C * TTS * L)
    bytes_accessed = (xs.size * 2 + x1f.size * 4 + x2f.size * 4
                      + wbig.size * 2 + u_mat.size * 2
                      + (fc1wT.size + fc1s.size + fc1b.size + fc2w.size
                         + wscale.size + wshift.size) * 4
                      + B * C * L * 4)
    cost = pl.CostEstimate(flops=flops, transcendentals=2 * B * C,
                           bytes_accessed=bytes_accessed)

    grid_spec = pltpu.PrefetchScalarGridSpec(
        num_scalar_prefetch=0,
        grid=(B,),
        in_specs=[
            # per-batch blocks (pipelined / double-buffered across the grid)
            pl.BlockSpec((None, 5 * C, TTS), lambda b: (b, 0, 0)),   # xs (bf16)
            pl.BlockSpec((None, C, L1), lambda b: (b, 0, 0)),        # x1 residual
            pl.BlockSpec((None, C, L2), lambda b: (b, 0, 0)),        # x2 residual
            # batch-invariant operands (same block every step -> fetched once)
            pl.BlockSpec((2 * C, 5 * C), lambda b: (0, 0)),          # fused conv W
            pl.BlockSpec((TTS, L), lambda b: (0, 0)),                # upsample U
            pl.BlockSpec((C, d), lambda b: (0, 0)),                  # fc1^T
            pl.BlockSpec((1, d), lambda b: (0, 0)),                  # fc1 BN scale
            pl.BlockSpec((1, d), lambda b: (0, 0)),                  # fc1 BN shift
            pl.BlockSpec((2 * C, d), lambda b: (0, 0)),              # fc2
            pl.BlockSpec((C, 1), lambda b: (0, 0)),                  # BN(W) scale
            pl.BlockSpec((C, 1), lambda b: (0, 0)),                  # BN(W) shift
        ],
        out_specs=[
            pl.BlockSpec((None, C, L1), lambda b: (b, 0, 0)),
            pl.BlockSpec((None, C, L2), lambda b: (b, 0, 0)),
        ],
    )

    return pl.pallas_call(
        kern,
        grid_spec=grid_spec,
        out_shape=(jax.ShapeDtypeStruct((B, C, L1), jnp.float32),
                   jax.ShapeDtypeStruct((B, C, L2), jnp.float32)),
        compiler_params=pltpu.CompilerParams(
            dimension_semantics=("parallel",),      # megacore-shard batch on v7x
            vmem_limit_bytes=32 * 1024 * 1024),     # fits v5e/v6e/v7x budgets
        cost_estimate=cost,
    )(xs, x1f, x2f, wbig, u_mat, fc1wT, fc1s, fc1b, fc2w, wscale, wshift)


# ----------------------------------------------------------------------------
# Constant structure matrices (host-side numpy; tiny)
# ----------------------------------------------------------------------------
def _upsample_matrix(frames, TT, hp, wp, k, h, w):
    """Maps z [C, TT*hp*wp] -> upsampled stream [C, len(frames)*h*w]."""
    S = hp * wp
    U = np.zeros((TT * S, len(frames) * h * w), np.float32)
    for t_out, f in enumerate(frames):
        for i in range(h):
            for j in range(w):
                r = f * S + (i // k) * wp + (j // k)
                col = t_out * h * w + i * w + j
                U[r, col] = 1.0
    return U


def _upsample(zs, k):
    b, c, t, hp, wp = zs.shape
    z = jnp.broadcast_to(zs[:, :, :, :, None, :, None], (b, c, t, hp, k, wp, k))
    return z.reshape(b, c, t, hp * k, wp * k)


# ----------------------------------------------------------------------------
# TKS forward (Pallas)
# ----------------------------------------------------------------------------
def tks_forward(x1, x2, params):
    b, c, t1, h1, w1 = x1.shape
    _, _, t2, h2, w2 = x2.shape
    k1, k2 = params["k1"], params["k2"]
    d = params["fc1w"].shape[0]
    hp, wp = h1 // k1, w1 // k1
    assert (hp, wp) == (h2 // k2, w2 // k2)
    S = hp * wp
    TT = t1 + t2
    L1, L2 = t1 * h1 * w1, t2 * h2 * w2

    # ---- avg pool + frame interleave (cheap data reorg, plain XLA) ----
    p1 = x1.reshape(b, c, t1, hp, k1, wp, k1).mean(axis=(4, 6))
    p2 = x2.reshape(b, c, t2, hp, k2, wp, k2).mean(axis=(4, 6))
    xc = jnp.concatenate(
        [p1[:, :, :1], p2[:, :, :3], p1[:, :, 1:], p2[:, :, 3:]], axis=2)
    xcf = xc.reshape(b, c, TT, S)

    # positions of x1 / x2 frames inside the interleaved clip (derived, not
    # hard-coded): x1[0], x2[0:3], x1[1:], x2[3:]
    n2a = min(3, t2)
    f1 = [0] + list(range(n2a + 1, n2a + t1))
    f2 = list(range(1, n2a + 1)) + list(range(n2a + t1, TT))

    # ---- 5 temporal shifts (offsets -2..+2), stacked along channels ----
    xpad = jnp.pad(xcf, ((0, 0), (0, 0), (2, 2), (0, 0)))
    shifts = [xpad[:, :, 2 + o:2 + o + TT] for o in (-2, -1, 0, 1, 2)]
    xs = jnp.stack(shifts, axis=1).reshape(b, 5 * c, TT * S).astype(jnp.bfloat16)

    # ---- fused temporal-conv weights: [2C, 5C] ----
    w1_, w2_ = params["w1"], params["w2"]
    wbig = jnp.zeros((2 * c, 5 * c), jnp.float32)
    wbig = wbig.at[:c, 1 * c:2 * c].set(w1_[:, :, 0])   # conv1 tap 0, offset -1
    wbig = wbig.at[:c, 2 * c:3 * c].set(w1_[:, :, 1])   # conv1 tap 1, offset  0
    wbig = wbig.at[:c, 3 * c:4 * c].set(w1_[:, :, 2])   # conv1 tap 2, offset +1
    wbig = wbig.at[c:, 0 * c:1 * c].set(w2_[:, :, 0])   # conv2 tap 0, offset -2
    wbig = wbig.at[c:, 2 * c:3 * c].set(w2_[:, :, 1])   # conv2 tap 1, offset  0
    wbig = wbig.at[c:, 4 * c:5 * c].set(w2_[:, :, 2])   # conv2 tap 2, offset +2
    wbig = wbig.astype(jnp.bfloat16)

    # ---- SK-gate parameters ----
    fc1wT = params["fc1w"].T                                        # [c, d]
    fc1_scale = params["fc1_gamma"] / jnp.sqrt(params["fc1_var"] + EPS)
    fc1s = fc1_scale.reshape(1, d)
    fc1b = (params["fc1_beta"] - params["fc1_mean"] * fc1_scale).reshape(1, d)
    fc2w = params["fc2w"]                                           # [2c, d]

    # ---- BN(W) affine ----
    w_scale = (params["W_gamma"] / jnp.sqrt(params["W_var"] + EPS)).reshape(c, 1)
    w_shift = (params["W_beta"] - params["W_mean"] * w_scale[:, 0]).reshape(c, 1)

    # ---- frame-select + upsample constant, both streams fused: [T*S, L1+L2]
    U1 = _upsample_matrix(f1, TT, hp, wp, k1, h1, w1)
    U2 = _upsample_matrix(f2, TT, hp, wp, k2, h2, w2)
    U = jnp.asarray(np.concatenate([U1, U2], axis=1), jnp.bfloat16)

    # TODO(synk): residuals kept f32 to stay bit-close to the reference; a
    # bf16 residual/output variant would halve HBM traffic on v5e if the
    # surrounding model tolerates it.
    x1f = x1.reshape(b, c, L1)
    x2f = x2.reshape(b, c, L2)

    out1f, out2f = _tks_pallas(
        xs, x1f, x2f, wbig, U, fc1wT, fc1s, fc1b, fc2w, w_scale, w_shift,
        B=b, C=c, d=d, L1=L1, L2=L2, TTS=TT * S)

    return out1f.reshape(x1.shape), out2f.reshape(x2.shape)


# ----------------------------------------------------------------------------
# Pure-JAX reference (mirrors the PyTorch forward)
# ----------------------------------------------------------------------------
def reference_forward(x1, x2, params):
    b, c, t1, h1, w1 = x1.shape
    _, _, t2, h2, w2 = x2.shape
    k1, k2 = params["k1"], params["k2"]
    p1 = x1.reshape(b, c, t1, h1 // k1, k1, w1 // k1, k1).mean(axis=(4, 6))
    p2 = x2.reshape(b, c, t2, h2 // k2, k2, w2 // k2, k2).mean(axis=(4, 6))
    xc = jnp.concatenate([p1[:, :, :1], p2[:, :, :3], p1[:, :, 1:], p2[:, :, 3:]], axis=2)
    T = xc.shape[2]

    def tconv(W, pad, dil):
        xp = jnp.pad(xc, ((0, 0), (0, 0), (pad, pad), (0, 0), (0, 0)))
        return sum(jnp.einsum("oi,bitpq->botpq", W[:, :, k],
                              xp[:, :, k * dil:k * dil + T]) for k in range(3))

    y1 = tconv(params["w1"], 1, 1)
    y2 = tconv(params["w2"], 2, 2)
    u = (y1 + y2).mean(axis=(2, 3, 4))                          # [b, c]
    s_pre = jnp.einsum("dc,bc->bd", params["fc1w"], u)
    scale = params["fc1_gamma"] / jnp.sqrt(params["fc1_var"] + EPS)
    s = jax.nn.relu((s_pre - params["fc1_mean"]) * scale + params["fc1_beta"])
    ab = jnp.einsum("od,bd->bo", params["fc2w"], s).reshape(b, 2, c)
    a = jax.nn.softmax(ab, axis=1)
    z = a[:, 0, :, None, None, None] * y1 + a[:, 1, :, None, None, None] * y2
    z1s = jnp.concatenate([z[:, :, 0:1], z[:, :, 4:5]], axis=2)
    z2s = jnp.concatenate([z[:, :, 1:4], z[:, :, 5:]], axis=2)

    Ws = params["W_gamma"] / jnp.sqrt(params["W_var"] + EPS)

    def bn(v):
        return ((v - params["W_mean"][None, :, None, None, None]) *
                Ws[None, :, None, None, None] +
                params["W_beta"][None, :, None, None, None])

    o1 = bn(_upsample(z1s, k1)) + x1
    o2 = bn(_upsample(z2s, k2)) + x2
    return o1, o2


def init_params(c, key):
    reduction, squeeze = 16, 8
    d = c // reduction
    k1, k2 = squeeze, squeeze // 2
    ks = jax.random.split(key, 7)
    # NOTE: the PyTorch module initialises W.weight/W.bias to 0 (identity
    # residual block). Here we use non-trivial BN(W) statistics so the test
    # actually exercises the fused conv / gate / upsample path.
    return dict(
        k1=k1, k2=k2,
        w1=jax.random.normal(ks[0], (c, c, 3), jnp.float32) / np.sqrt(3 * c),
        w2=jax.random.normal(ks[1], (c, c, 3), jnp.float32) / np.sqrt(3 * c),
        fc1w=jax.random.normal(ks[2], (d, c), jnp.float32) / np.sqrt(c),
        fc2w=jax.random.normal(ks[3], (2 * c, d), jnp.float32) / np.sqrt(d),
        fc1_gamma=jnp.ones((d,), jnp.float32), fc1_beta=jnp.zeros((d,), jnp.float32),
        fc1_mean=jnp.zeros((d,), jnp.float32), fc1_var=jnp.ones((d,), jnp.float32),
        W_gamma=1.0 + 0.1 * jax.random.normal(ks[4], (c,), jnp.float32),
        W_beta=0.1 * jax.random.normal(ks[5], (c,), jnp.float32),
        W_mean=0.1 * jax.random.normal(ks[6], (c,), jnp.float32),
        W_var=jnp.ones((c,), jnp.float32),
    )


if __name__ == "__main__":
    key = jax.random.PRNGKey(0)
    kx1, kx2, kp = jax.random.split(key, 3)
    B, C = 2, 32                       # in_channel=32 -> d = 32//16 = 2
    x1 = jax.random.normal(kx1, (B, C, 2, 32, 16), jnp.float32)
    x2 = jax.random.normal(kx2, (B, C, 4, 16, 8), jnp.float32)
    params = init_params(C, kp)

    out1, out2 = tks_forward(x1, x2, params)
    jax.block_until_ready((out1, out2))

    r1, r2 = reference_forward(x1, x2, params)
    assert out1.shape == x1.shape and out2.shape == x2.shape
    ok = (jnp.allclose(out1, r1, atol=1e-2, rtol=1e-2) and
          jnp.allclose(out2, r2, atol=1e-2, rtol=1e-2))
    assert bool(ok), "Pallas TKS output mismatch vs JAX reference"
    print("KERNEL_OK")
</pallas_src>

<mosaic_0001>
module attributes {stable_mosaic.version = 11 : i64} {
  func.func @_tks_kernel(%arg0: i32, %arg1: memref<1x160x48xbf16, #tpu.memory_space<vmem>>, %arg2: memref<1x32x1024xf32, #tpu.memory_space<vmem>>, %arg3: memref<1x32x512xf32, #tpu.memory_space<vmem>>, %arg4: memref<64x160xbf16, #tpu.memory_space<vmem>>, %arg5: memref<48x1536xbf16, #tpu.memory_space<vmem>>, %arg6: memref<32x2xf32, #tpu.memory_space<vmem>>, %arg7: memref<1x2xf32, #tpu.memory_space<vmem>>, %arg8: memref<1x2xf32, #tpu.memory_space<vmem>>, %arg9: memref<64x2xf32, #tpu.memory_space<vmem>>, %arg10: memref<32x1xf32, #tpu.memory_space<vmem>>, %arg11: memref<32x1xf32, #tpu.memory_space<vmem>>, %arg12: memref<1x32x1024xf32, #tpu.memory_space<vmem>>, %arg13: memref<1x32x512xf32, #tpu.memory_space<vmem>>) attributes {dimension_semantics = [#tpu.dimension_semantics<parallel>], iteration_bounds = array<i64: 2>, scalar_prefetch = 0 : i64, scratch_operands = 0 : i64, tpu.core_type = #tpu.core_type<tc>, window_params = [{transform_indices = @transform_0, window_bounds = array<i64: 1, 160, 48>}, {transform_indices = @transform_1, window_bounds = array<i64: 1, 32, 1024>}, {transform_indices = @transform_2, window_bounds = array<i64: 1, 32, 512>}, {pipeline_mode = #tpu.pipeline_mode<synchronous>, transform_indices = @transform_3, window_bounds = array<i64: 64, 160>}, {pipeline_mode = #tpu.pipeline_mode<synchronous>, transform_indices = @transform_4, window_bounds = array<i64: 48, 1536>}, {pipeline_mode = #tpu.pipeline_mode<synchronous>, transform_indices = @transform_5, window_bounds = array<i64: 32, 2>}, {pipeline_mode = #tpu.pipeline_mode<synchronous>, transform_indices = @transform_6, window_bounds = array<i64: 1, 2>}, {pipeline_mode = #tpu.pipeline_mode<synchronous>, transform_indices = @transform_7, window_bounds = array<i64: 1, 2>}, {pipeline_mode = #tpu.pipeline_mode<synchronous>, transform_indices = @transform_8, window_bounds = array<i64: 64, 2>}, {pipeline_mode = #tpu.pipeline_mode<synchronous>, transform_indices = @transform_9, window_bounds = array<i64: 32, 1>}, {pipeline_mode = #tpu.pipeline_mode<synchronous>, transform_indices = @transform_10, window_bounds = array<i64: 32, 1>}, {transform_indices = @transform_11, window_bounds = array<i64: 1, 32, 1024>}, {transform_indices = @transform_12, window_bounds = array<i64: 1, 32, 512>}]} {
    %c0 = arith.constant 0 : index
    %c0_0 = arith.constant 0 : index
    %0 = vector.load %arg4[%c0, %c0_0] : memref<64x160xbf16, #tpu.memory_space<vmem>>, vector<64x160xbf16>
    %c0_1 = arith.constant 0 : index
    %c0_2 = arith.constant 0 : index
    %c0_3 = arith.constant 0 : index
    %1 = vector.load %arg1[%c0_1, %c0_2, %c0_3] : memref<1x160x48xbf16, #tpu.memory_space<vmem>>, vector<1x160x48xbf16>
    %2 = vector.shape_cast %1 : vector<1x160x48xbf16> to vector<160x48xbf16>
    %cst = arith.constant dense<0.000000e+00> : vector<64x48xf32>
    %3 = tpu.matmul %0, %2, %cst {dimension_numbers = #tpu.dot_dimension_numbers<[1], [0], [0], [1], [0, 0, 1, 1], [], []>} : vector<64x160xbf16>, vector<160x48xbf16>, vector<64x48xf32> -> vector<64x48xf32>
    %4 = vector.extract_strided_slice %3 {offsets = [0, 0], sizes = [32, 48], strides = [1, 1]} : vector<64x48xf32> to vector<32x48xf32>
    %5 = vector.extract_strided_slice %3 {offsets = [32, 0], sizes = [32, 48], strides = [1, 1]} : vector<64x48xf32> to vector<32x48xf32>
    %6 = arith.addf %4, %5 : vector<32x48xf32>
    %cst_4 = arith.constant dense<0.000000e+00> : vector<32xf32>
    %7 = vector.multi_reduction <add>, %6, %cst_4 [1] : vector<32x48xf32> to vector<32xf32>
    %8 = vector.shape_cast %7 : vector<32xf32> to vector<32x1xf32>
    %cst_5 = arith.constant 4.800000e+01 : f32
    %9 = vector.broadcast %cst_5 : f32 to vector<32x1xf32>
    %10 = arith.divf %8, %9 : vector<32x1xf32>
    %c0_6 = arith.constant 0 : index
    %c0_7 = arith.constant 0 : index
    %11 = vector.load %arg6[%c0_6, %c0_7] : memref<32x2xf32, #tpu.memory_space<vmem>>, vector<32x2xf32>
    %12 = vector.broadcast %10 : vector<32x1xf32> to vector<32x2xf32>
    %13 = arith.mulf %11, %12 : vector<32x2xf32>
    %cst_8 = arith.constant dense<0.000000e+00> : vector<2xf32>
    %14 = vector.multi_reduction <add>, %13, %cst_8 [0] : vector<32x2xf32> to vector<2xf32>
    %15 = vector.shape_cast %14 : vector<2xf32> to vector<1x2xf32>
    %c0_9 = arith.constant 0 : index
    %c0_10 = arith.constant 0 : index
    %16 = vector.load %arg7[%c0_9, %c0_10] : memref<1x2xf32, #tpu.memory_space<vmem>>, vector<1x2xf32>
    %17 = arith.mulf %15, %16 : vector<1x2xf32>
    %c0_11 = arith.constant 0 : index
    %c0_12 = arith.constant 0 : index
    %18 = vector.load %arg8[%c0_11, %c0_12] : memref<1x2xf32, #tpu.memory_space<vmem>>, vector<1x2xf32>
    %19 = arith.addf %17, %18 : vector<1x2xf32>
    %cst_13 = arith.constant 0.000000e+00 : f32
    %20 = vector.broadcast %cst_13 : f32 to vector<1x2xf32>
    %21 = arith.maximumf %19, %20 : vector<1x2xf32>
    %c0_14 = arith.constant 0 : index
    %c0_15 = arith.constant 0 : index
    %22 = vector.load %arg9[%c0_14, %c0_15] : memref<64x2xf32, #tpu.memory_space<vmem>>, vector<64x2xf32>
    %23 = vector.broadcast %21 : vector<1x2xf32> to vector<64x2xf32>
    %24 = arith.mulf %22, %23 : vector<64x2xf32>
    %cst_16 = arith.constant dense<0.000000e+00> : vector<64xf32>
    %25 = vector.multi_reduction <add>, %24, %cst_16 [1] : vector<64x2xf32> to vector<64xf32>
    %26 = vector.shape_cast %25 : vector<64xf32> to vector<64x1xf32>
    %27 = vector.extract_strided_slice %26 {offsets = [0, 0], sizes = [32, 1], strides = [1, 1]} : vector<64x1xf32> to vector<32x1xf32>
    %28 = vector.extract_strided_slice %26 {offsets = [32, 0], sizes = [32, 1], strides = [1, 1]} : vector<64x1xf32> to vector<32x1xf32>
    %29 = arith.maximumf %27, %28 : vector<32x1xf32>
    %30 = arith.subf %27, %29 : vector<32x1xf32>
    %31 = math.exp %30 : vector<32x1xf32>
    %32 = arith.subf %28, %29 : vector<32x1xf32>
    %33 = math.exp %32 : vector<32x1xf32>
    %34 = arith.addf %31, %33 : vector<32x1xf32>
    %35 = tpu.reciprocal %34 {approx = true} : vector<32x1xf32> -> vector<32x1xf32>
    %c0_17 = arith.constant 0 : index
    %c0_18 = arith.constant 0 : index
    %36 = vector.load %arg10[%c0_17, %c0_18] : memref<32x1xf32, #tpu.memory_space<vmem>>, vector<32x1xf32>
    %37 = arith.mulf %31, %35 : vector<32x1xf32>
    %38 = arith.mulf %37, %36 : vector<32x1xf32>
    %39 = arith.mulf %33, %35 : vector<32x1xf32>
    %40 = arith.mulf %39, %36 : vector<32x1xf32>
    %41 = vector.broadcast %38 : vector<32x1xf32> to vector<32x48xf32>
    %42 = arith.mulf %41, %4 : vector<32x48xf32>
    %43 = vector.broadcast %40 : vector<32x1xf32> to vector<32x48xf32>
    %44 = arith.mulf %43, %5 : vector<32x48xf32>
    %45 = arith.addf %42, %44 : vector<32x48xf32>
    %46 = arith.truncf %45 : vector<32x48xf32> to vector<32x48xbf16>
    %c0_19 = arith.constant 0 : index
    %c0_20 = arith.constant 0 : index
    %47 = vector.load %arg5[%c0_19, %c0_20] : memref<48x1536xbf16, #tpu.memory_space<vmem>>, vector<48x1536xbf16>
    %cst_21 = arith.constant dense<0.000000e+00> : vector<32x1536xf32>
    %48 = tpu.matmul %46, %47, %cst_21 {dimension_numbers = #tpu.dot_dimension_numbers<[1], [0], [0], [1], [0, 0, 1, 1], [], []>} : vector<32x48xbf16>, vector<48x1536xbf16>, vector<32x1536xf32> -> vector<32x1536xf32>
    %c0_22 = arith.constant 0 : index
    %c0_23 = arith.constant 0 : index
    %49 = vector.load %arg11[%c0_22, %c0_23] : memref<32x1xf32, #tpu.memory_space<vmem>>, vector<32x1xf32>
    %50 = vector.extract_strided_slice %48 {offsets = [0, 0], sizes = [32, 1024], strides = [1, 1]} : vector<32x1536xf32> to vector<32x1024xf32>
    %51 = vector.broadcast %49 : vector<32x1xf32> to vector<32x1024xf32>
    %52 = arith.addf %50, %51 : vector<32x1024xf32>
    %c0_24 = arith.constant 0 : index
    %c0_25 = arith.constant 0 : index
    %c0_26 = arith.constant 0 : index
    %53 = vector.load %arg2[%c0_24, %c0_25, %c0_26] : memref<1x32x1024xf32, #tpu.memory_space<vmem>>, vector<1x32x1024xf32>
    %54 = vector.shape_cast %53 : vector<1x32x1024xf32> to vector<32x1024xf32>
    %55 = arith.addf %52, %54 : vector<32x1024xf32>
    %c0_27 = arith.constant 0 : index
    %c0_28 = arith.constant 0 : index
    %c0_29 = arith.constant 0 : index
    %56 = vector.load %arg12[%c0_27, %c0_28, %c0_29] : memref<1x32x1024xf32, #tpu.memory_space<vmem>>, vector<1x32x1024xf32>
    %57 = vector.shape_cast %56 : vector<1x32x1024xf32> to vector<32x1024xf32>
    %58 = vector.shape_cast %55 : vector<32x1024xf32> to vector<1x32x1024xf32>
    tpu.vector_store %arg12[%c0_27, %c0_28, %c0_29], %58 {strides = array<i32>} : memref<1x32x1024xf32, #tpu.memory_space<vmem>>, vector<1x32x1024xf32>,
    %59 = vector.extract_strided_slice %48 {offsets = [0, 1024], sizes = [32, 512], strides = [1, 1]} : vector<32x1536xf32> to vector<32x512xf32>
    %60 = vector.broadcast %49 : vector<32x1xf32> to vector<32x512xf32>
    %61 = arith.addf %59, %60 : vector<32x512xf32>
    %c0_30 = arith.constant 0 : index
    %c0_31 = arith.constant 0 : index
    %c0_32 = arith.constant 0 : index
    %62 = vector.load %arg3[%c0_30, %c0_31, %c0_32] : memref<1x32x512xf32, #tpu.memory_space<vmem>>, vector<1x32x512xf32>
    %63 = vector.shape_cast %62 : vector<1x32x512xf32> to vector<32x512xf32>
    %64 = arith.addf %61, %63 : vector<32x512xf32>
    %c0_33 = arith.constant 0 : index
    %c0_34 = arith.constant 0 : index
    %c0_35 = arith.constant 0 : index
    %65 = vector.load %arg13[%c0_33, %c0_34, %c0_35] : memref<1x32x512xf32, #tpu.memory_space<vmem>>, vector<1x32x512xf32>
    %66 = vector.shape_cast %65 : vector<1x32x512xf32> to vector<32x512xf32>
    %67 = vector.shape_cast %64 : vector<32x512xf32> to vector<1x32x512xf32>
    tpu.vector_store %arg13[%c0_33, %c0_34, %c0_35], %67 {strides = array<i32>} : memref<1x32x512xf32, #tpu.memory_space<vmem>>, vector<1x32x512xf32>,
    return
  }
  func.func @transform_0(%arg0: i32) -> (i32, i32, i32) {
    %c0_i32 = arith.constant 0 : i32
    %c0_i32_0 = arith.constant 0 : i32
    %c0_i32_1 = arith.constant 0 : i32
    return %arg0, %c0_i32, %c0_i32_0 : i32, i32, i32
  }
  func.func @transform_1(%arg0: i32) -> (i32, i32, i32) {
    %c0_i32 = arith.constant 0 : i32
    %c0_i32_0 = arith.constant 0 : i32
    %c0_i32_1 = arith.constant 0 : i32
    return %arg0, %c0_i32, %c0_i32_0 : i32, i32, i32
  }
  func.func @transform_2(%arg0: i32) -> (i32, i32, i32) {
    %c0_i32 = arith.constant 0 : i32
    %c0_i32_0 = arith.constant 0 : i32
    %c0_i32_1 = arith.constant 0 : i32
    return %arg0, %c0_i32, %c0_i32_0 : i32, i32, i32
  }
  func.func @transform_3(%arg0: i32) -> (i32, i32) {
    %c0_i32 = arith.constant 0 : i32
    %c0_i32_0 = arith.constant 0 : i32
    %c0_i32_1 = arith.constant 0 : i32
    return %c0_i32, %c0_i32_0 : i32, i32
  }
  func.func @transform_4(%arg0: i32) -> (i32, i32) {
    %c0_i32 = arith.constant 0 : i32
    %c0_i32_0 = arith.constant 0 : i32
    %c0_i32_1 = arith.constant 0 : i32
    return %c0_i32, %c0_i32_0 : i32, i32
  }
  func.func @transform_5(%arg0: i32) -> (i32, i32) {
    %c0_i32 = arith.constant 0 : i32
    %c0_i32_0 = arith.constant 0 : i32
    %c0_i32_1 = arith.constant 0 : i32
    return %c0_i32, %c0_i32_0 : i32, i32
  }
  func.func @transform_6(%arg0: i32) -> (i32, i32) {
    %c0_i32 = arith.constant 0 : i32
    %c0_i32_0 = arith.constant 0 : i32
    %c0_i32_1 = arith.constant 0 : i32
    return %c0_i32, %c0_i32_0 : i32, i32
  }
  func.func @transform_7(%arg0: i32) -> (i32, i32) {
    %c0_i32 = arith.constant 0 : i32
    %c0_i32_0 = arith.constant 0 : i32
    %c0_i32_1 = arith.constant 0 : i32
    return %c0_i32, %c0_i32_0 : i32, i32
  }
  func.func @transform_8(%arg0: i32) -> (i32, i32) {
    %c0_i32 = arith.constant 0 : i32
    %c0_i32_0 = arith.constant 0 : i32
    %c0_i32_1 = arith.constant 0 : i32
    return %c0_i32, %c0_i32_0 : i32, i32
  }
  func.func @transform_9(%arg0: i32) -> (i32, i32) {
    %c0_i32 = arith.constant 0 : i32
    %c0_i32_0 = arith.constant 0 : i32
    %c0_i32_1 = arith.constant 0 : i32
    return %c0_i32, %c0_i32_0 : i32, i32
  }
  func.func @transform_10(%arg0: i32) -> (i32, i32) {
    %c0_i32 = arith.constant 0 : i32
    %c0_i32_0 = arith.constant 0 : i32
    %c0_i32_1 = arith.constant 0 : i32
    return %c0_i32, %c0_i32_0 : i32, i32
  }
  func.func @transform_11(%arg0: i32) -> (i32, i32, i32) {
    %c0_i32 = arith.constant 0 : i32
    %c0_i32_0 = arith.constant 0 : i32
    %c0_i32_1 = arith.constant 0 : i32
    return %arg0, %c0_i32, %c0_i32_0 : i32, i32, i32
  }
  func.func @transform_12(%arg0: i32) -> (i32, i32, i32) {
    %c0_i32 = arith.constant 0 : i32
    %c0_i32_0 = arith.constant 0 : i32
    %c0_i32_1 = arith.constant 0 : i32
    return %arg0, %c0_i32, %c0_i32_0 : i32, i32, i32
  }
}

</mosaic_0001>

<llo_original>
// kernel: tpu_custom_call.1
$region0: #{tpu_custom_call.1}
  #allocation0 [shape = 'u32[]', space=smem, size = 0x4, offset = 0x4, fixed_abs, tag = 'smem constant byte address 0x4 - core index']
  #allocation1 [shape = 'u32[144,128]{1,0:T(1,128)}', space=vmem, size = 0x12000, scoped, tag = 'internal scratch']
  %s0 = inlined_call_operand.vmem [shape: bf16[2,160,48], index: 0, kind: input, shape index: {}]
  %s1 = inlined_call_operand.hbm [shape: f32[2,32,1024], index: 1, kind: input, shape index: {}]
  %s2 = inlined_call_operand.hbm [shape: f32[2,32,512], index: 2, kind: input, shape index: {}]
  %s3 = inlined_call_operand.vmem [shape: bf16[64,160], index: 3, kind: input, shape index: {}]
  %s4 = inlined_call_operand.vmem [shape: bf16[48,1536], index: 4, kind: input, shape index: {}]
  %s5 = inlined_call_operand.vmem [shape: f32[32,2], index: 5, kind: input, shape index: {}]
  %s6 = inlined_call_operand.vmem [shape: f32[1,2], index: 6, kind: input, shape index: {}]
  %s7 = inlined_call_operand.vmem [shape: f32[1,2], index: 7, kind: input, shape index: {}]
  %s8 = inlined_call_operand.vmem [shape: f32[64,2], index: 8, kind: input, shape index: {}]
  %s9 = inlined_call_operand.vmem [shape: f32[32,1], index: 9, kind: input, shape index: {}]
  %s10 = inlined_call_operand.vmem [shape: f32[32,1], index: 10, kind: input, shape index: {}]
  %s11 = inlined_call_operand.hbm [shape: f32[2,32,1024], index: 11, kind: output, shape index: {0}]
  %s12 = inlined_call_operand.hbm [shape: f32[2,32,512], index: 12, kind: output, shape index: {1}]
  %13 = xla_tuple %s11, %s12
  %s14 = sld [smem:[#allocation0]]
  $region93: #{tpu_custom_call.1} parent=0
    _
  %s16 = ssub.s32 1, %s14
  %s17 = scalar_select 0, %s16, %s14
  $region1: #{tpu_custom_call.1} parent=0
    #allocation2 [shape = 'u8[262144]{0}', space=vmem, size = 0x40000, scoped, tag = 'input window, operand 1']
    #allocation3 [shape = 's32[2]{0}', space=sflag, size = 0x8, scoped, tag = 'scoped memory for tpu_custom_call.1']
    #allocation4 [shape = 's32[2]{0}', space=sflag, size = 0x8, scoped, tag = 'scoped memory for tpu_custom_call.1']
    #allocation5 [shape = 'u8[131072]{0}', space=vmem, size = 0x20000, scoped, tag = 'input window, operand 2']
    #allocation6 [shape = 's32[2]{0}', space=sflag, size = 0x8, scoped, tag = 'scoped memory for tpu_custom_call.1']
    #allocation7 [shape = 'u8[262144]{0}', space=vmem, size = 0x40000, scoped, tag = 'output window, operand 0']
    #allocation8 [shape = 'u8[131072]{0}', space=vmem, size = 0x20000, scoped, tag = 'output window, operand 1']
    #allocation9 [shape = 's32[2]{0}', space=sflag, size = 0x8, scoped, tag = 'scoped memory for tpu_custom_call.1']
    %18 = vsyncpa [#allocation3], 0
    %s19 = scalar_lea.sflag [#allocation3], 1
    %20 = vsyncpa %s19, 0
    %21 = vsyncpa [#allocation6], 0
    %s22 = scalar_lea.sflag [#allocation6], 1
    %23 = vsyncpa %s22, 0
    %24 = vsyncpa [#allocation4], 0
    %s25 = scalar_lea.sflag [#allocation4], 1
    %26 = vsyncpa %s25, 0
    %27 = vsyncpa [#allocation9], 0
    %s28 = scalar_lea.sflag [#allocation9], 1
    %29 = vsyncpa %s28, 0
    loop: start=0, step=1, limit=4
    $region2: #{tpu_custom_call.1} parent=1 // loop_pre_header
      _
    $region3: #{tpu_custom_call.1} parent=1 // loop_header
      %s31 = sphi 0, %s35
      %p32 = scmp.ge.s32.totalorder %s31, 4
      %s41 = sphi 0, %s43
      %s44 = sphi 0, %s41
      %s45 = sphi 0, %s44
      %s61 = sphi 0, %s45
      %s67 = sphi 0, %s69
      %s70 = sphi 0, %s67
      %s71 = sphi 0, %s70
      %s87 = sphi 0, %s71
      %s93 = sphi 0, %s95
      %s96 = sphi 0, %s93
      %s97 = sphi 0, %s96
      %s113 = sphi 0, %s97
      %s117 = sphi 0, %s117
      %s119 = sphi 0, %s117
      %s120 = sphi 0, %s119
      %s134 = sphi 0, %s120
      %s138 = sphi 0, %s138
      %s140 = sphi 0, %s138
      %s141 = sphi 0, %s140
      %s155 = sphi 0, %s141
      %s159 = sphi 0, %s159
      %s161 = sphi 0, %s159
      %s162 = sphi 0, %s161
      %s176 = sphi 0, %s162
      %s180 = sphi 0, %s180
      %s182 = sphi 0, %s180
      %s183 = sphi 0, %s182
      %s197 = sphi 0, %s183
      %s201 = sphi 0, %s201
      %s203 = sphi 0, %s201
      %s204 = sphi 0, %s203
      %s218 = sphi 0, %s204
      %s222 = sphi 0, %s222
      %s224 = sphi 0, %s222
      %s225 = sphi 0, %s224
      %s239 = sphi 0, %s225
      %s243 = sphi 0, %s243
      %s245 = sphi 0, %s243
      %s246 = sphi 0, %s245
      %s260 = sphi 0, %s246
      %s264 = sphi 0, %s264
      %s266 = sphi 0, %s264
      %s267 = sphi 0, %s266
      %s281 = sphi 0, %s267
      %s287 = sphi 0, %s289
      %s290 = sphi 0, %s287
      %s291 = sphi 0, %s290
      %s307 = sphi 0, %s291
      %s313 = sphi 0, %s315
      %s316 = sphi 0, %s313
      %s317 = sphi 0, %s316
      %s333 = sphi 0, %s317
    $region4: #{tpu_custom_call.1} parent=1 // loop_header_branch
      %34 = sbr.rel (%p32) target = $region8
    $region5: #{tpu_custom_call.1} parent=1 // loop_body
      %s36 = ssub.s32 %s31, 1
      %s37 = ssub.s32 %s31, 2
      %s38 = sadd.s32 %s31, 1
      %s39 = ssub.s32 %s31, %s38
      %p40 = scmp.eq.s32.totalorder %s39, 0
      %s42 = sadd.s32 %s41, 1
      %s43 = scalar_select %p40, %s41, %s42
      %p46 = pneg %p40
      %p47 = scmp.eq.s32.totalorder %s31, 1
      %p48 = por %p46, %p47
      %p49 = scmp.ne.s32.totalorder %s41, %s44
      %p50 = scmp.eq.s32.totalorder %s31, 0
      %p51 = por %p49, %p50
      %p52 = scmp.ne.s32.totalorder %s41, %s44
      %p53 = scmp.eq.s32.totalorder %s36, 1
      %p54 = por %p52, %p53
      %p55 = scmp.ne.s32.totalorder %s44, %s45
      %p56 = scmp.eq.s32.totalorder %s36, 0
      %p57 = por %p55, %p56
      %p58 = scmp.ne.s32.totalorder %s44, %s45
      %p59 = scmp.eq.s32.totalorder %s37, 1
      %p60 = por %p58, %p59
      %p62 = scmp.ne.s32.totalorder %s45, %s61
      %p63 = scmp.eq.s32.totalorder %s37, 0
      %p64 = por %p62, %p63
      %s65 = ssub.s32 %s31, %s38
      %p66 = scmp.eq.s32.totalorder %s65, 0
      %s68 = sadd.s32 %s67, 1
      %s69 = scalar_select %p66, %s67, %s68
      %p72 = pneg %p66
      %p73 = scmp.eq.s32.totalorder %s31, 1
      %p74 = por %p72, %p73
      %p75 = scmp.ne.s32.totalorder %s67, %s70
      %p76 = scmp.eq.s32.totalorder %s31, 0
      %p77 = por %p75, %p76
      %p78 = scmp.ne.s32.totalorder %s67, %s70
      %p79 = scmp.eq.s32.totalorder %s36, 1
      %p80 = por %p78, %p79
      %p81 = scmp.ne.s32.totalorder %s70, %s71
      %p82 = scmp.eq.s32.totalorder %s36, 0
      %p83 = por %p81, %p82
      %p84 = scmp.ne.s32.totalorder %s70, %s71
      %p85 = scmp.eq.s32.totalorder %s37, 1
      %p86 = por %p84, %p85
      %p88 = scmp.ne.s32.totalorder %s71, %s87
      %p89 = scmp.eq.s32.totalorder %s37, 0
      %p90 = por %p88, %p89
      %s91 = ssub.s32 %s31, %s38
      %p92 = scmp.eq.s32.totalorder %s91, 0
      %s94 = sadd.s32 %s93, 1
      %s95 = scalar_select %p92, %s93, %s94
      %p98 = pneg %p92
      %p99 = scmp.eq.s32.totalorder %s31, 1
      %p100 = por %p98, %p99
      %p101 = scmp.ne.s32.totalorder %s93, %s96
      %p102 = scmp.eq.s32.totalorder %s31, 0
      %p103 = por %p101, %p102
      %p104 = scmp.ne.s32.totalorder %s93, %s96
      %p105 = scmp.eq.s32.totalorder %s36, 1
      %p106 = por %p104, %p105
      %p107 = scmp.ne.s32.totalorder %s96, %s97
      %p108 = scmp.eq.s32.totalorder %s36, 0
      %p109 = por %p107, %p108
      %p110 = scmp.ne.s32.totalorder %s96, %s97
      %p111 = scmp.eq.s32.totalorder %s37, 1
      %p112 = por %p110, %p111
      %p114 = scmp.ne.s32.totalorder %s97, %s113
      %p115 = scmp.eq.s32.totalorder %s37, 0
      %p116 = por %p114, %p115
      %s118 = sadd.s32 %s117, 1
      %p121 = scmp.eq.s32.totalorder %s31, 1
      %p122 = scmp.ne.s32.totalorder %s117, %s119
      %p123 = scmp.eq.s32.totalorder %s31, 0
      %p124 = por %p122, %p123
      %p125 = scmp.ne.s32.totalorder %s117, %s119
      %p126 = scmp.eq.s32.totalorder %s36, 1
      %p127 = por %p125, %p126
      %p128 = scmp.ne.s32.totalorder %s119, %s120
      %p129 = scmp.eq.s32.totalorder %s36, 0
      %p130 = por %p128, %p129
      %p131 = scmp.ne.s32.totalorder %s119, %s120
      %p132 = scmp.eq.s32.totalorder %s37, 1
      %p133 = por %p131, %p132
      %p135 = scmp.ne.s32.totalorder %s120, %s134
      %p136 = scmp.eq.s32.totalorder %s37, 0
      %p137 = por %p135, %p136
      %s139 = sadd.s32 %s138, 1
      %p142 = scmp.eq.s32.totalorder %s31, 1
      %p143 = scmp.ne.s32.totalorder %s138, %s140
      %p144 = scmp.eq.s32.totalorder %s31, 0
      %p145 = por %p143, %p144
      %p146 = scmp.ne.s32.totalorder %s138, %s140
      %p147 = scmp.eq.s32.totalorder %s36, 1
      %p148 = por %p146, %p147
      %p149 = scmp.ne.s32.totalorder %s140, %s141
      %p150 = scmp.eq.s32.totalorder %s36, 0
      %p151 = por %p149, %p150
      %p152 = scmp.ne.s32.totalorder %s140, %s141
      %p153 = scmp.eq.s32.totalorder %s37, 1
      %p154 = por %p152, %p153
      %p156 = scmp.ne.s32.totalorder %s141, %s155
      %p157 = scmp.eq.s32.totalorder %s37, 0
      %p158 = por %p156, %p157
      %s160 = sadd.s32 %s159, 1
      %p163 = scmp.eq.s32.totalorder %s31, 1
      %p164 = scmp.ne.s32.totalorder %s159, %s161
      %p165 = scmp.eq.s32.totalorder %s31, 0
      %p166 = por %p164, %p165
      %p167 = scmp.ne.s32.totalorder %s159, %s161
      %p168 = scmp.eq.s32.totalorder %s36, 1
      %p169 = por %p167, %p168
      %p170 = scmp.ne.s32.totalorder %s161, %s162
      %p171 = scmp.eq.s32.totalorder %s36, 0
      %p172 = por %p170, %p171
      %p173 = scmp.ne.s32.totalorder %s161, %s162
      %p174 = scmp.eq.s32.totalorder %s37, 1
      %p175 = por %p173, %p174
      %p177 = scmp.ne.s32.totalorder %s162, %s176
      %p178 = scmp.eq.s32.totalorder %s37, 0
      %p179 = por %p177, %p178
      %s181 = sadd.s32 %s180, 1
      %p184 = scmp.eq.s32.totalorder %s31, 1
      %p185 = scmp.ne.s32.totalorder %s180, %s182
      %p186 = scmp.eq.s32.totalorder %s31, 0
      %p187 = por %p185, %p186
      %p188 = scmp.ne.s32.totalorder %s180, %s182
      %p189 = scmp.eq.s32.totalorder %s36, 1
      %p190 = por %p188, %p189
      %p191 = scmp.ne.s32.totalorder %s182, %s183
      %p192 = scmp.eq.s32.totalorder %s36, 0
      %p193 = por %p191, %p192
      %p194 = scmp.ne.s32.totalorder %s182, %s183
      %p195 = scmp.eq.s32.totalorder %s37, 1
      %p196 = por %p194, %p195
      %p198 = scmp.ne.s32.totalorder %s183, %s197
      %p199 = scmp.eq.s32.totalorder %s37, 0
      %p200 = por %p198, %p199
      %s202 = sadd.s32 %s201, 1
      %p205 = scmp.eq.s32.totalorder %s31, 1
      %p206 = scmp.ne.s32.totalorder %s201, %s203
      %p207 = scmp.eq.s32.totalorder %s31, 0
      %p208 = por %p206, %p207
      %p209 = scmp.ne.s32.totalorder %s201, %s203
      %p210 = scmp.eq.s32.totalorder %s36, 1
      %p211 = por %p209, %p210
      %p212 = scmp.ne.s32.totalorder %s203, %s204
      %p213 = scmp.eq.s32.totalorder %s36, 0
      %p214 = por %p212, %p213
      %p215 = scmp.ne.s32.totalorder %s203, %s204
      %p216 = scmp.eq.s32.totalorder %s37, 1
      %p217 = por %p215, %p216
      %p219 = scmp.ne.s32.totalorder %s204, %s218
      %p220 = scmp.eq.s32.totalorder %s37, 0
      %p221 = por %p219, %p220
      %s223 = sadd.s32 %s222, 1
      %p226 = scmp.eq.s32.totalorder %s31, 1
      %p227 = scmp.ne.s32.totalorder %s222, %s224
      %p228 = scmp.eq.s32.totalorder %s31, 0
      %p229 = por %p227, %p228
      %p230 = scmp.ne.s32.totalorder %s222, %s224
      %p231 = scmp.eq.s32.totalorder %s36, 1
      %p232 = por %p230, %p231
      %p233 = scmp.ne.s32.totalorder %s224, %s225
      %p234 = scmp.eq.s32.totalorder %s36, 0
      %p235 = por %p233, %p234
      %p236 = scmp.ne.s32.totalorder %s224, %s225
      %p237 = scmp.eq.s32.totalorder %s37, 1
      %p238 = por %p236, %p237
      %p240 = scmp.ne.s32.totalorder %s225, %s239
      %p241 = scmp.eq.s32.totalorder %s37, 0
      %p242 = por %p240, %p241
      %s244 = sadd.s32 %s243, 1
      %p247 = scmp.eq.s32.totalorder %s31, 1
      %p248 = scmp.ne.s32.totalorder %s243, %s245
      %p249 = scmp.eq.s32.totalorder %s31, 0
      %p250 = por %p248, %p249
      %p251 = scmp.ne.s32.totalorder %s243, %s245
      %p252 = scmp.eq.s32.totalorder %s36, 1
      %p253 = por %p251, %p252
      %p254 = scmp.ne.s32.totalorder %s245, %s246
      %p255 = scmp.eq.s32.totalorder %s36, 0
      %p256 = por %p254, %p255
      %p257 = scmp.ne.s32.totalorder %s245, %s246
      %p258 = scmp.eq.s32.totalorder %s37, 1
      %p259 = por %p257, %p258
      %p261 = scmp.ne.s32.totalorder %s246, %s260
      %p262 = scmp.eq.s32.totalorder %s37, 0
      %p263 = por %p261, %p262
      %s265 = sadd.s32 %s264, 1
      %p268 = scmp.eq.s32.totalorder %s31, 1
      %p269 = scmp.ne.s32.totalorder %s264, %s266
      %p270 = scmp.eq.s32.totalorder %s31, 0
      %p271 = por %p269, %p270
      %p272 = scmp.ne.s32.totalorder %s264, %s266
      %p273 = scmp.eq.s32.totalorder %s36, 1
      %p274 = por %p272, %p273
      %p275 = scmp.ne.s32.totalorder %s266, %s267
      %p276 = scmp.eq.s32.totalorder %s36, 0
      %p277 = por %p275, %p276
      %p278 = scmp.ne.s32.totalorder %s266, %s267
      %p279 = scmp.eq.s32.totalorder %s37, 1
      %p280 = por %p278, %p279
      %p282 = scmp.ne.s32.totalorder %s267, %s281
      %p283 = scmp.eq.s32.totalorder %s37, 0
      %p284 = por %p282, %p283
      %s285 = ssub.s32 %s31, %s38
      %p286 = scmp.eq.s32.totalorder %s285, 0
      %s288 = sadd.s32 %s287, 1
      %s289 = scalar_select %p286, %s287, %s288
      %p292 = pneg %p286
      %p293 = scmp.eq.s32.totalorder %s31, 1
      %p294 = por %p292, %p293
      %p295 = scmp.ne.s32.totalorder %s287, %s290
      %p296 = scmp.eq.s32.totalorder %s31, 0
      %p297 = por %p295, %p296
      %p298 = scmp.ne.s32.totalorder %s287, %s290
      %p299 = scmp.eq.s32.totalorder %s36, 1
      %p300 = por %p298, %p299
      %p301 = scmp.ne.s32.totalorder %s290, %s291
      %p302 = scmp.eq.s32.totalorder %s36, 0
      %p303 = por %p301, %p302
      %p304 = scmp.ne.s32.totalorder %s290, %s291
      %p305 = scmp.eq.s32.totalorder %s37, 1
      %p306 = por %p304, %p305
      %p308 = scmp.ne.s32.totalorder %s291, %s307
      %p309 = scmp.eq.s32.totalorder %s37, 0
      %p310 = por %p308, %p309
      %s311 = ssub.s32 %s31, %s38
      %p312 = scmp.eq.s32.totalorder %s311, 0
      %s314 = sadd.s32 %s313, 1
      %s315 = scalar_select %p312, %s313, %s314
      %p318 = pneg %p312
      %p319 = scmp.eq.s32.totalorder %s31, 1
      %p320 = por %p318, %p319
      %p321 = scmp.ne.s32.totalorder %s313, %s316
      %p322 = scmp.eq.s32.totalorder %s31, 0
      %p323 = por %p321, %p322
      %p324 = scmp.ne.s32.totalorder %s313, %s316
      %p325 = scmp.eq.s32.totalorder %s36, 1
      %p326 = por %p324, %p325
      %p327 = scmp.ne.s32.totalorder %s316, %s317
      %p328 = scmp.eq.s32.totalorder %s36, 0
      %p329 = por %p327, %p328
      %p330 = scmp.ne.s32.totalorder %s316, %s317
      %p331 = scmp.eq.s32.totalorder %s37, 1
      %p332 = por %p330, %p331
      %p334 = scmp.ne.s32.totalorder %s317, %s333
      %p335 = scmp.eq.s32.totalorder %s37, 0
      %p336 = por %p334, %p335
      %p337 = scmp.le.s32.totalorder 1, %s31
      %p338 = scmp.lt.s32.totalorder %s31, 3
      %p339 = pnand %p337, %p338
      %p340 = pneg %p339
      // Predicated region
      $region9: #{tpu_custom_call.1} parent=5 // pred_check
        _
      $region10: #{tpu_custom_call.1} parent=5 // pred_check_branch
        %342 = sbr.rel (%p339) target = $region12
      $region11: #{tpu_custom_call.1} parent=5 // pred_region
        %s343 = ssub.s32 %s31, 1
        // Predicated region
        $region13: #{tpu_custom_call.1} parent=11 // pred_check
          %p344 = pneg %p130
        $region14: #{tpu_custom_call.1} parent=11 // pred_check_branch
          %346 = sbr.rel (%p344) target = $region16
        $region15: #{tpu_custom_call.1} parent=11 // pred_region
          _
        $region16: #{tpu_custom_call.1} parent=11 // pred_fallthru
          _
        // Predicated region
        $region17: #{tpu_custom_call.1} parent=11 // pred_check
          %p347 = pneg %p151
        $region18: #{tpu_custom_call.1} parent=11 // pred_check_branch
          %349 = sbr.rel (%p347) target = $region20
        $region19: #{tpu_custom_call.1} parent=11 // pred_region
          _
        $region20: #{tpu_custom_call.1} parent=11 // pred_fallthru
          _
        // Predicated region
        $region21: #{tpu_custom_call.1} parent=11 // pred_check
          %p350 = pneg %p172
        $region22: #{tpu_custom_call.1} parent=11 // pred_check_branch
          %352 = sbr.rel (%p350) target = $region24
        $region23: #{tpu_custom_call.1} parent=11 // pred_region
          _
        $region24: #{tpu_custom_call.1} parent=11 // pred_fallthru
          _
        // Predicated region
        $region25: #{tpu_custom_call.1} parent=11 // pred_check
          %p353 = pneg %p193
        $region26: #{tpu_custom_call.1} parent=11 // pred_check_branch
          %355 = sbr.rel (%p353) target = $region28
        $region27: #{tpu_custom_call.1} parent=11 // pred_region
          _
        $region28: #{tpu_custom_call.1} parent=11 // pred_fallthru
          _
        // Predicated region
        $region29: #{tpu_custom_call.1} parent=11 // pred_check
          %p356 = pneg %p214
        $region30: #{tpu_custom_call.1} parent=11 // pred_check_branch
          %358 = sbr.rel (%p356) target = $region32
        $region31: #{tpu_custom_call.1} parent=11 // pred_region
          _
        $region32: #{tpu_custom_call.1} parent=11 // pred_fallthru
          _
        // Predicated region
        $region33: #{tpu_custom_call.1} parent=11 // pred_check
          %p359 = pneg %p235
        $region34: #{tpu_custom_call.1} parent=11 // pred_check_branch
          %361 = sbr.rel (%p359) target = $region36
        $region35: #{tpu_custom_call.1} parent=11 // pred_region
          _
        $region36: #{tpu_custom_call.1} parent=11 // pred_fallthru
          _
        // Predicated region
        $region37: #{tpu_custom_call.1} parent=11 // pred_check
          %p362 = pneg %p256
        $region38: #{tpu_custom_call.1} parent=11 // pred_check_branch
          %364 = sbr.rel (%p362) target = $region40
        $region39: #{tpu_custom_call.1} parent=11 // pred_region
          _
        $region40: #{tpu_custom_call.1} parent=11 // pred_fallthru
          _
        // Predicated region
        $region41: #{tpu_custom_call.1} parent=11 // pred_check
          %p365 = pneg %p277
        $region42: #{tpu_custom_call.1} parent=11 // pred_check_branch
          %367 = sbr.rel (%p365) target = $region44
        $region43: #{tpu_custom_call.1} parent=11 // pred_region
          _
        $region44: #{tpu_custom_call.1} parent=11 // pred_fallthru
          _
      $region12: #{tpu_custom_call.1} parent=5 // pred_fallthru
        _
      %p368 = scmp.lt.s32.totalorder %s31, 2
      // Predicated region
      $region45: #{tpu_custom_call.1} parent=5 // pred_check
        %p369 = pneg %p368
      $region46: #{tpu_custom_call.1} parent=5 // pred_check_branch
        %371 = sbr.rel (%p369) target = $region48
      $region47: #{tpu_custom_call.1} parent=5 // pred_region
        // Predicated region
        $region49: #{tpu_custom_call.1} parent=47 // pred_check
          %p372 = pneg %p51
        $region50: #{tpu_custom_call.1} parent=47 // pred_check_branch
          %374 = sbr.rel (%p372) target = $region52
        $region51: #{tpu_custom_call.1} parent=47 // pred_region
          %p375 = scmp.lt.s32.totalorder %s31, 1
          %s376 = scalar_select %p375, %s31, 1
          %s377 = smul.addr %s376, 20
          %s378 = smul.addr %s377, 4
          %s379 = scalar_lea.vmem %s0, %s378
        $region52: #{tpu_custom_call.1} parent=47 // pred_fallthru
          _
        // Predicated region
        $region53: #{tpu_custom_call.1} parent=47 // pred_check
          %p380 = pneg %p77
        $region54: #{tpu_custom_call.1} parent=47 // pred_check_branch
          %382 = sbr.rel (%p380) target = $region56
        $region55: #{tpu_custom_call.1} parent=47 // pred_region
          %s383 = sand.u32 %s67, 1
          %s384 = scalar_lea.sflag [#allocation3], %s383
          %s385 = sand.u32 %s67, 1
          %s386 = smul.addr %s385, 256
          %s387 = scalar_lea.vmem [#allocation2], %s386
          %s389 = ssub.s32 4096, 4096
          %390 = vsyncadd %s384, %s389
          %s391 = smul.addr %s31, 32
          %s392 = smul.addr %s391, 128
          %s393 = scalar_lea.hbm %s1, %s392
          %s394 = sshll.u32 %s387, 4
          %s395 = int_to_ptr.vmem [resolvable:$true] %s394
          %400 = dma.hbm_to_vmem [thread:$0]  %s393, 4096, %s395, %s384, 1024, 1024, 64
        $region56: #{tpu_custom_call.1} parent=47 // pred_fallthru
          _
        // Predicated region
        $region57: #{tpu_custom_call.1} parent=47 // pred_check
          %p401 = pneg %p103
        $region58: #{tpu_custom_call.1} parent=47 // pred_check_branch
          %403 = sbr.rel (%p401) target = $region60
        $region59: #{tpu_custom_call.1} parent=47 // pred_region
          %s404 = sand.u32 %s93, 1
          %s405 = scalar_lea.sflag [#allocation6], %s404
          %s406 = sand.u32 %s93, 1
          %s407 = smul.addr %s406, 128
          %s408 = scalar_lea.vmem [#allocation5], %s407
          %s410 = ssub.s32 2048, 2048
          %411 = vsyncadd %s405, %s410
          %s412 = smul.addr %s31, 16
          %s413 = smul.addr %s412, 128
          %s414 = scalar_lea.hbm %s2, %s413
          %s415 = sshll.u32 %s408, 4
          %s416 = int_to_ptr.vmem [resolvable:$true] %s415
          %421 = dma.hbm_to_vmem [thread:$0]  %s414, 2048, %s416, %s405, 512, 512, 32
        $region60: #{tpu_custom_call.1} parent=47 // pred_fallthru
          _
      $region48: #{tpu_custom_call.1} parent=5 // pred_fallthru
        _
      %p422 = scmp.le.s32.totalorder 1, %s31
      %p423 = scmp.lt.s32.totalorder %s31, 3
      %p424 = pnand %p422, %p423
      %p425 = pneg %p424
      // Predicated region
      $region61: #{tpu_custom_call.1} parent=5 // pred_check
        _
      $region62: #{tpu_custom_call.1} parent=5 // pred_check_branch
        %427 = sbr.rel (%p424) target = $region64
      $region63: #{tpu_custom_call.1} parent=5 // pred_region
        %s428 = ssub.s32 %s31, 1
        %s429 = sand.u32 %s70, 1
        %s430 = scalar_lea.sflag [#allocation3], %s429
        %s431 = sand.u32 %s70, 1
        %s432 = smul.addr %s431, 256
        %s433 = scalar_lea.vmem [#allocation2], %s432
        // Predicated region
        $region65: #{tpu_custom_call.1} parent=63 // pred_check
          %p434 = pneg %p83
        $region66: #{tpu_custom_call.1} parent=63 // pred_check_branch
          %436 = sbr.rel (%p434) target = $region68
        $region67: #{tpu_custom_call.1} parent=63 // pred_region
          %437 = dma.done %s430, 4096
        $region68: #{tpu_custom_call.1} parent=63 // pred_fallthru
          _
        %s438 = sand.u32 %s96, 1
        %s439 = scalar_lea.sflag [#allocation6], %s438
        %s440 = sand.u32 %s96, 1
        %s441 = smul.addr %s440, 128
        %s442 = scalar_lea.vmem [#allocation5], %s441
        // Predicated region
        $region69: #{tpu_custom_call.1} parent=63 // pred_check
          %p443 = pneg %p109
        $region70: #{tpu_custom_call.1} parent=63 // pred_check_branch
          %445 = sbr.rel (%p443) target = $region72
        $region71: #{tpu_custom_call.1} parent=63 // pred_region
          %446 = dma.done %s439, 2048
        $region72: #{tpu_custom_call.1} parent=63 // pred_fallthru
          _
        %p447 = scmp.lt.s32.totalorder %s36, 1
        %s448 = scalar_select %p447, %s36, 1
        %s449 = smul.addr %s448, 20
        %s450 = smul.addr %s449, 4
        %s451 = scalar_lea.vmem %s0, %s450
        %p452 = pneg %p57
        %p453 = pneg %p54
        %s454 = sand.u32 %s70, 1
        %s455 = scalar_lea.sflag [#allocation3], %s454
        %s456 = sand.u32 %s70, 1
        %s457 = smul.addr %s456, 256
        %s458 = scalar_lea.vmem [#allocation2], %s457
        %p459 = pneg %p83
        %p460 = pneg %p80
        %s461 = sand.u32 %s96, 1
        %s462 = scalar_lea.sflag [#allocation6], %s461
        %s463 = sand.u32 %s96, 1
        %s464 = smul.addr %s463, 128
        %s465 = scalar_lea.vmem [#allocation5], %s464
        %p466 = pneg %p109
        %p467 = pneg %p106
        %p468 = pneg %p130
        %p469 = pneg %p127
        %p470 = pneg %p151
        %p471 = pneg %p148
        %p472 = pneg %p172
        %p473 = pneg %p169
        %p474 = pneg %p193
        %p475 = pneg %p190
        %p476 = pneg %p214
        %p477 = pneg %p211
        %p478 = pneg %p235
        %p479 = pneg %p232
        %p480 = pneg %p256
        %p481 = pneg %p253
        %p482 = pneg %p277
        %p483 = pneg %p274
        %p484 = pneg %p303
        %p485 = pneg %p300
        %s486 = sand.u32 %s290, 1
        %s487 = scalar_lea.sflag [#allocation4], %s486
        %s488 = sand.u32 %s290, 1
        %s489 = smul.addr %s488, 256
        %s490 = scalar_lea.vmem [#allocation7], %s489
        %p491 = pneg %p329
        %p492 = pneg %p326
        %s493 = sand.u32 %s316, 1
        %s494 = scalar_lea.sflag [#allocation9], %s493
        %s495 = sand.u32 %s316, 1
        %s496 = smul.addr %s495, 128
        %s497 = scalar_lea.vmem [#allocation8], %s496
        %p498 = scmp.lt.s32.totalorder %s36, 1
        %s499 = scalar_select %p498, %s36, 1
        %s500 = smul.addr %s499, 20
        %s501 = smul.addr %s500, 4
        %s502 = scalar_lea.vmem %s0, %s501
        %v504 = vld [vmem:[%s3] sm:$0xff]
        %v505 = vld [vmem:[%s3 + $0x8] sm:$0xff]
        %v506 = vld [vmem:[%s3 + $0x10] sm:$0xff]
        %v507 = vld [vmem:[%s3 + $0x18] sm:$0xff]
        %v508 = vld [vmem:[%s3 + $0x20] sm:$0xff]
        %v509 = vld [vmem:[%s3 + $0x28] sm:$0xff]
        %v510 = vld [vmem:[%s3 + $0x30] sm:$0xff]
        %v511 = vld [vmem:[%s3 + $0x38] sm:$0xff]
        %v512 = vld [vmem:[%s502] sm:$0xf]
        %v513 = vld [vmem:[%s502 + $0x4] sm:$0xf]
        %v514 = vld [vmem:[%s502 + $0x8] sm:$0xf]
        %v515 = vld [vmem:[%s502 + $0xc] sm:$0xf]
        %v516 = vld [vmem:[%s502 + $0x10] sm:$0xf]
        %v517 = vld [vmem:[%s502 + $0x14] sm:$0xf]
        %v518 = vld [vmem:[%s502 + $0x18] sm:$0xf]
        %v519 = vld [vmem:[%s502 + $0x1c] sm:$0xf]
        %v520 = vld [vmem:[%s502 + $0x20] sm:$0xf]
        %v521 = vld [vmem:[%s502 + $0x24] sm:$0xf]
        %v522 = vld [vmem:[%s502 + $0x28] sm:$0xf]
        %v523 = vld [vmem:[%s502 + $0x2c] sm:$0xf]
        %v524 = vld [vmem:[%s502 + $0x30] sm:$0xf]
        %v525 = vld [vmem:[%s502 + $0x34] sm:$0xf]
        %v526 = vld [vmem:[%s502 + $0x38] sm:$0xf]
        %v527 = vld [vmem:[%s502 + $0x3c] sm:$0xf]
        %v528 = vld [vmem:[%s502 + $0x40] sm:$0xf]
        %v529 = vld [vmem:[%s502 + $0x44] sm:$0xf]
        %v530 = vld [vmem:[%s502 + $0x48] sm:$0xf]
        %v531 = vld [vmem:[%s502 + $0x4c] sm:$0xf]
        %v540 = vunpack.c.l.b16 %v504
        %v541 = vunpack.c.h.b16 %v504
        %v542 = vunpack.c.l.b16 %v505
        %v543 = vunpack.c.h.b16 %v505
        %v544 = vunpack.c.l.b16 %v506
        %v545 = vunpack.c.h.b16 %v506
        %v546 = vunpack.c.l.b16 %v507
        %v547 = vunpack.c.h.b16 %v507
        %v548 = vunpack.c.l.b16 %v508
        %v549 = vunpack.c.h.b16 %v508
        %v550 = vunpack.c.l.b16 %v509
        %v551 = vunpack.c.h.b16 %v509
        %v552 = vunpack.c.l.b16 %v510
        %v553 = vunpack.c.h.b16 %v510
        %v554 = vunpack.c.l.b16 %v511
        %v555 = vunpack.c.h.b16 %v511
        %v556 = vpack.c.b16 %v542, %v540
        %v557 = vpack.c.b16 %v543, %v541
        %v558 = vpack.c.b16 %v546, %v544
        %v559 = vpack.c.b16 %v547, %v545
        %v560 = vpack.c.b16 %v550, %v548
        %v561 = vpack.c.b16 %v551, %v549
        %v562 = vpack.c.b16 %v554, %v552
        %v563 = vpack.c.b16 %v555, %v553
        %v588 = vunpack.c.l.b16 %v512
        %v589 = vunpack.c.l.b16 %v513
        %v590 = vunpack.c.l.b16 %v514
        %v591 = vunpack.c.l.b16 %v515
        %v592 = vunpack.c.l.b16 %v516
        %v593 = vunpack.c.l.b16 %v517
        %v594 = vunpack.c.l.b16 %v518
        %v595 = vunpack.c.l.b16 %v519
        %v596 = vunpack.c.l.b16 %v520
        %v597 = vunpack.c.l.b16 %v521
        %v598 = vunpack.c.l.b16 %v522
        %v599 = vunpack.c.l.b16 %v523
        %v600 = vunpack.c.l.b16 %v524
        %v601 = vunpack.c.l.b16 %v525
        %v602 = vunpack.c.l.b16 %v526
        %v603 = vunpack.c.l.b16 %v527
        %v604 = vunpack.c.l.b16 %v528
        %v605 = vunpack.c.l.b16 %v529
        %v606 = vunpack.c.l.b16 %v530
        %v607 = vunpack.c.l.b16 %v531
        %v608 = vpack.c.b16 %v589, %v588
        %v609 = vpack.c.b16 %v591, %v590
        %v610 = vpack.c.b16 %v593, %v592
        %v611 = vpack.c.b16 %v595, %v594
        %v612 = vpack.c.b16 %v597, %v596
        %v613 = vpack.c.b16 %v599, %v598
        %v614 = vpack.c.b16 %v601, %v600
        %v615 = vpack.c.b16 %v603, %v602
        %v616 = vpack.c.b16 %v605, %v604
        %v617 = vpack.c.b16 %v607, %v606
        %vm628 = vcmask 261120
        %v630 = vsel %vm628, %v557, 0
        %v633 = vsel %vm628, %v559, 0
        %v636 = vsel %vm628, %v561, 0
        %v639 = vsel %vm628, %v563, 0
        %641 = vmatprep.subr.bf16.mxu0 0
        %642 = vmatpush1.bf16.msra.mxu0 %v615
        %643 = vmatprep.subr.bf16.mxu0 0
        %644 = vmatpush1.bf16.msra.mxu0 %v614
        %645 = vmatprep.subr.bf16.mxu0 0
        %646 = vmatpush1.bf16.msra.mxu0 %v613
        %647 = vmatprep.subr.bf16.mxu0 0
        %648 = vmatpush1.bf16.msra.mxu0 %v612
        %649 = vmatprep.subr.bf16.mxu0 0
        %650 = vmatpush1.bf16.msra.mxu0 %v611
        %651 = vmatprep.subr.bf16.mxu0 0
        %652 = vmatpush1.bf16.msra.mxu0 %v610
        %653 = vmatprep.subr.bf16.mxu0 0
        %654 = vmatpush1.bf16.msra.mxu0 %v609
        %655 = vmatprep.subr.bf16.mxu0 0
        %656 = vmatpush1.bf16.msra.mxu0 %v608
        %657 = vmatprep.subr.bf16.mxu0 0
        %658 = vmatpush2.bf16.msra.mxu0 0
        %659 = vmatprep.subr.bf16.mxu0 0
        %660 = vmatpush2.bf16.msra.mxu0 0
        %661 = vmatprep.subr.bf16.mxu0 0
        %662 = vmatpush2.bf16.msra.mxu0 0
        %663 = vmatprep.subr.bf16.mxu0 0
        %664 = vmatpush2.bf16.msra.mxu0 0
        %665 = vmatprep.subr.bf16.mxu0 0
        %666 = vmatpush2.bf16.msra.mxu0 0
        %667 = vmatprep.subr.bf16.mxu0 0
        %668 = vmatpush2.bf16.msra.mxu0 0
        %669 = vmatprep.subr.bf16.mxu0 0
        %670 = vmatpush2.bf16.msra.mxu0 %v617
        %671 = vmatprep.subr.bf16.mxu0 0
        %672 = vmatpush2.bf16.msra.mxu0 %v616
        %673 = vmatprep.mubr.bf16.mxu0 %v630
        %674 = vmatmul.mubr.bf16.gmra.mxu0 %v556
        %v675 = vpop.f32.mrf.mxu0
        %v676 = vadd.f32 0.0, %v675
        %v677 = vpop.f32.mrf.mxu0
        %v678 = vpop.f32.mrf.mxu0
        %v679 = vadd.f32 0.0, %v678
        %v680 = vpop.f32.mrf.mxu0
        %681 = vmatprep.mubr.bf16.mxu0 %v633
        %682 = vmatmul.mubr.bf16.gmra.mxu0 %v558
        %v683 = vpop.f32.mrf.mxu0
        %v684 = vadd.f32 0.0, %v683
        %v685 = vpop.f32.mrf.mxu0
        %v686 = vpop.f32.mrf.mxu0
        %v687 = vadd.f32 0.0, %v686
        %v688 = vpop.f32.mrf.mxu0
        %689 = vmatprep.mubr.bf16.mxu0 %v636
        %690 = vmatmul.mubr.bf16.gmra.mxu0 %v560
        %v691 = vpop.f32.mrf.mxu0
        %v692 = vadd.f32 0.0, %v691
        %v693 = vpop.f32.mrf.mxu0
        %v694 = vpop.f32.mrf.mxu0
        %v695 = vadd.f32 0.0, %v694
        %v696 = vpop.f32.mrf.mxu0
        %697 = vmatprep.mubr.bf16.mxu0 %v639
        %698 = vmatmul.mubr.bf16.gmra.mxu0 %v562
        %v699 = vpop.f32.mrf.mxu0
        %v700 = vadd.f32 0.0, %v699
        %v701 = vpop.f32.mrf.mxu0
        %v702 = vpop.f32.mrf.mxu0
        %v703 = vadd.f32 0.0, %v702
        %v704 = vpop.f32.mrf.mxu0
        %705 = vdwg.mxu0
        %v706 = vadd.f32 %v676, %v692
        %v707 = vadd.f32 %v679, %v695
        %v708 = vadd.f32 %v684, %v700
        %v709 = vadd.f32 %v687, %v703
        %vm710 = vcmask 392192
        %v711 = vsel %vm710, %v706, 0.0
        %712 = vadd.xlane.f32.xlu0 %v711
        %v713 = vpop.xlane.xlu0 %712
        %v714 = vsel %vm710, %v707, 0.0
        %715 = vadd.xlane.f32.xlu0 %v714
        %v716 = vpop.xlane.xlu0 %715
        %v717 = vsel %vm710, %v708, 0.0
        %718 = vadd.xlane.f32.xlu0 %v717
        %v719 = vpop.xlane.xlu0 %718
        %v720 = vsel %vm710, %v709, 0.0
        %721 = vadd.xlane.f32.xlu0 %v720
        %v722 = vpop.xlane.xlu0 %721
        %v723 = vrcp.pop 48.0
        %v724 = vmul.f32 %v713, %v723
        %v725 = vmul.f32 %v716, %v723
        %v726 = vmul.f32 %v719, %v723
        %v727 = vmul.f32 %v722, %v723
        %v728 = vld [vmem:[%s5] sm:$0xff]
        %v729 = vld [vmem:[%s5 + $0x8] sm:$0xff]
        %v730 = vld [vmem:[%s5 + $0x10] sm:$0xff]
        %v731 = vld [vmem:[%s5 + $0x18] sm:$0xff]
        %v732 = vmul.f32 %v728, %v724
        %v733 = vmul.f32 %v729, %v725
        %v734 = vmul.f32 %v730, %v726
        %v735 = vmul.f32 %v731, %v727
        %vm736 = vcmask 15360
        %v737 = vsel %vm736, %v732, 0.0
        %v738 = vsel %vm736, %v733, 0.0
        %v739 = vadd.f32 %v737, %v738
        %v740 = vsel %vm736, %v734, 0.0
        %v741 = vadd.f32 %v739, %v740
        %v742 = vsel %vm736, %v735, 0.0
        %v743 = vadd.f32 %v741, %v742
        %v744 = vrot.slane %v743, 4
        %v745 = vadd.f32 %v743, %v744
        %v746 = vrot.slane %v745, 2
        %v747 = vadd.f32 %v745, %v746
        %v748 = vrot.slane %v747, 1
        %v749 = vadd.f32 %v747, %v748
        %v750 = vld [vmem:[%s6] sm:$0x1]
        %v751 = vmul.f32 %v749, %v750
        %v752 = vld [vmem:[%s7] sm:$0x1]
        %v753 = vadd.f32 %v751, %v752
        %v754 = vmax.f32 %v753, 0.0
        %v755 = vld [vmem:[%s8] sm:$0xff]
        %v756 = vld [vmem:[%s8 + $0x8] sm:$0xff]
        %v757 = vld [vmem:[%s8 + $0x10] sm:$0xff]
        %v758 = vld [vmem:[%s8 + $0x18] sm:$0xff]
        %v759 = vld [vmem:[%s8 + $0x20] sm:$0xff]
        %v760 = vld [vmem:[%s8 + $0x28] sm:$0xff]
        %v761 = vld [vmem:[%s8 + $0x30] sm:$0xff]
        %v762 = vld [vmem:[%s8 + $0x38] sm:$0xff]
        %v763 = vlaneseq
        %v764 = vshrl.u32 %v763, 7
        %v765 = vsub.s32 0, %v764
        %v766 = vrot.slane %v754, %v765
        %v767 = vmul.f32 %v755, %v766
        %v768 = vmul.f32 %v756, %v766
        %v769 = vmul.f32 %v757, %v766
        %v770 = vmul.f32 %v758, %v766
        %v771 = vmul.f32 %v759, %v766
        %v772 = vmul.f32 %v760, %v766
        %v773 = vmul.f32 %v761, %v766
        %v774 = vmul.f32 %v762, %v766
        %v775 = vsel %vm736, %v767, 0.0
        %776 = vadd.xlane.f32.xlu0 %v775
        %v777 = vpop.xlane.xlu0 %776
        %v778 = vsel %vm736, %v768, 0.0
        %779 = vadd.xlane.f32.xlu0 %v778
        %v780 = vpop.xlane.xlu0 %779
        %v781 = vsel %vm736, %v769, 0.0
        %782 = vadd.xlane.f32.xlu0 %v781
        %v783 = vpop.xlane.xlu0 %782
        %v784 = vsel %vm736, %v770, 0.0
        %785 = vadd.xlane.f32.xlu0 %v784
        %v786 = vpop.xlane.xlu0 %785
        %v787 = vsel %vm736, %v771, 0.0
        %788 = vadd.xlane.f32.xlu0 %v787
        %v789 = vpop.xlane.xlu0 %788
        %v790 = vsel %vm736, %v772, 0.0
        %791 = vadd.xlane.f32.xlu0 %v790
        %v792 = vpop.xlane.xlu0 %791
        %v793 = vsel %vm736, %v773, 0.0
        %794 = vadd.xlane.f32.xlu0 %v793
        %v795 = vpop.xlane.xlu0 %794
        %v796 = vsel %vm736, %v774, 0.0
        %797 = vadd.xlane.f32.xlu0 %v796
        %v798 = vpop.xlane.xlu0 %797
        %v799 = vmax.f32 %v777, %v789
        %v800 = vmax.f32 %v780, %v792
        %v801 = vmax.f32 %v783, %v795
        %v802 = vmax.f32 %v786, %v798
        %v803 = vsub.f32 %v777, %v799
        %v804 = vsub.f32 %v780, %v800
        %v805 = vsub.f32 %v783, %v801
        %v806 = vsub.f32 %v786, %v802
        %v807 = vmul.f32 %v803, 1.442695
        %v808 = vpow.pop %v807
        %v809 = vmul.f32 %v804, 1.442695
        %v810 = vpow.pop %v809
        %v811 = vmul.f32 %v805, 1.442695
        %v812 = vpow.pop %v811
        %v813 = vmul.f32 %v806, 1.442695
        %v814 = vpow.pop %v813
        %v815 = vsub.f32 %v789, %v799
        %v816 = vsub.f32 %v792, %v800
        %v817 = vsub.f32 %v795, %v801
        %v818 = vsub.f32 %v798, %v802
        %v819 = vmul.f32 %v815, 1.442695
        %v820 = vpow.pop %v819
        %v821 = vmul.f32 %v816, 1.442695
        %v822 = vpow.pop %v821
        %v823 = vmul.f32 %v817, 1.442695
        %v824 = vpow.pop %v823
        %v825 = vmul.f32 %v818, 1.442695
        %v826 = vpow.pop %v825
        %v827 = vadd.f32 %v808, %v820
        %v828 = vadd.f32 %v810, %v822
        %v829 = vadd.f32 %v812, %v824
        %v830 = vadd.f32 %v814, %v826
        %v831 = vrcp.pop %v827
        %v832 = vrcp.pop %v828
        %v833 = vrcp.pop %v829
        %v834 = vrcp.pop %v830
        %v835 = vld [vmem:[%s9] sm:$0xff]
        %v836 = vld [vmem:[%s9 + $0x8] sm:$0xff]
        %v837 = vld [vmem:[%s9 + $0x10] sm:$0xff]
        %v838 = vld [vmem:[%s9 + $0x18] sm:$0xff]
        %v839 = vmul.f32 %v808, %v831
        %v840 = vmul.f32 %v810, %v832
        %v841 = vmul.f32 %v812, %v833
        %v842 = vmul.f32 %v814, %v834
        %v843 = vmul.f32 %v839, %v835
        %v844 = vmul.f32 %v840, %v836
        %v845 = vmul.f32 %v841, %v837
        %v846 = vmul.f32 %v842, %v838
        %v847 = vmul.f32 %v820, %v831
        %v848 = vmul.f32 %v822, %v832
        %v849 = vmul.f32 %v824, %v833
        %v850 = vmul.f32 %v826, %v834
        %v851 = vmul.f32 %v847, %v835
        %v852 = vmul.f32 %v848, %v836
        %v853 = vmul.f32 %v849, %v837
        %v854 = vmul.f32 %v850, %v838
        %856 = vset.pattern.permute.xlu0 0
        %857 = vperm.xlu0 %856, %v843
        %v858 = vpop.permute.xlu0 %857
        %861 = vset.pattern.permute.xlu0 0
        %862 = vperm.xlu0 %861, %v844
        %v863 = vpop.permute.xlu0 %862
        %866 = vset.pattern.permute.xlu0 0
        %867 = vperm.xlu0 %866, %v845
        %v868 = vpop.permute.xlu0 %867
        %871 = vset.pattern.permute.xlu0 0
        %872 = vperm.xlu0 %871, %v846
        %v873 = vpop.permute.xlu0 %872
        %v875 = vmul.f32 %v858, %v676
        %v876 = vmul.f32 %v863, %v679
        %v877 = vmul.f32 %v868, %v684
        %v878 = vmul.f32 %v873, %v687
        %880 = vset.pattern.permute.xlu0 0
        %881 = vperm.xlu0 %880, %v851
        %v882 = vpop.permute.xlu0 %881
        %885 = vset.pattern.permute.xlu0 0
        %886 = vperm.xlu0 %885, %v852
        %v887 = vpop.permute.xlu0 %886
        %890 = vset.pattern.permute.xlu0 0
        %891 = vperm.xlu0 %890, %v853
        %v892 = vpop.permute.xlu0 %891
        %895 = vset.pattern.permute.xlu0 0
        %896 = vperm.xlu0 %895, %v854
        %v897 = vpop.permute.xlu0 %896
        %v899 = vmul.f32 %v882, %v692
        %v900 = vmul.f32 %v887, %v695
        %v901 = vmul.f32 %v892, %v700
        %v902 = vmul.f32 %v897, %v703
        %v903 = vadd.f32 %v875, %v899
        %v904 = vadd.f32 %v876, %v900
        %v905 = vadd.f32 %v877, %v901
        %v906 = vadd.f32 %v878, %v902
        %v907 = vpack.c.bf16 %v904, %v903
        %v908 = vpack.c.bf16 %v906, %v905
        %v909 = vld [vmem:[%s4] sm:$0xff]
        %v910 = vld [vmem:[%s4 + $0x8] sm:$0xff]
        %v911 = vld [vmem:[%s4 + $0x10] sm:$0xff]
        %v912 = vld [vmem:[%s4 + $0x18] sm:$0xff]
        %v913 = vld [vmem:[%s4 + $0x20] sm:$0xff]
        %v914 = vld [vmem:[%s4 + $0x28] sm:$0xff]
        %v915 = vld [vmem:[%s4 + $0x30] sm:$0xff]
        %v916 = vld [vmem:[%s4 + $0x38] sm:$0xff]
        %v917 = vld [vmem:[%s4 + $0x40] sm:$0xff]
        %v918 = vld [vmem:[%s4 + $0x48] sm:$0xff]
        %v919 = vld [vmem:[%s4 + $0x50] sm:$0xff]
        %v920 = vld [vmem:[%s4 + $0x58] sm:$0xff]
        %v921 = vld [vmem:[%s4 + $0x60] sm:$0xff]
        %v922 = vld [vmem:[%s4 + $0x68] sm:$0xff]
        %v923 = vld [vmem:[%s4 + $0x70] sm:$0xff]
        %v924 = vld [vmem:[%s4 + $0x78] sm:$0xff]
        %v925 = vld [vmem:[%s4 + $0x80] sm:$0xff]
        %v926 = vld [vmem:[%s4 + $0x88] sm:$0xff]
        %v927 = vld [vmem:[%s4 + $0x90] sm:$0xff]
        %v928 = vld [vmem:[%s4 + $0x98] sm:$0xff]
        %v929 = vld [vmem:[%s4 + $0xa0] sm:$0xff]
        %v930 = vld [vmem:[%s4 + $0xa8] sm:$0xff]
        %v931 = vld [vmem:[%s4 + $0xb0] sm:$0xff]
        %v932 = vld [vmem:[%s4 + $0xb8] sm:$0xff]
        %v933 = vld [vmem:[%s4 + $0xc0] sm:$0xff]
        %v934 = vld [vmem:[%s4 + $0xc8] sm:$0xff]
        %v935 = vld [vmem:[%s4 + $0xd0] sm:$0xff]
        %v936 = vld [vmem:[%s4 + $0xd8] sm:$0xff]
        %v937 = vld [vmem:[%s4 + $0xe0] sm:$0xff]
        %v938 = vld [vmem:[%s4 + $0xe8] sm:$0xff]
        %v939 = vld [vmem:[%s4 + $0xf0] sm:$0xff]
        %v940 = vld [vmem:[%s4 + $0xf8] sm:$0xff]
        %v941 = vld [vmem:[%s4 + $0x100] sm:$0xff]
        %v942 = vld [vmem:[%s4 + $0x108] sm:$0xff]
        %v943 = vld [vmem:[%s4 + $0x110] sm:$0xff]
        %v944 = vld [vmem:[%s4 + $0x118] sm:$0xff]
        %v981 = vunpack.c.l.b16 %v909
        %v982 = vunpack.c.h.b16 %v909
        %v983 = vunpack.c.l.b16 %v910
        %v984 = vunpack.c.h.b16 %v910
        %v985 = vunpack.c.l.b16 %v911
        %v986 = vunpack.c.h.b16 %v911
        %v987 = vunpack.c.l.b16 %v912
        %v988 = vunpack.c.h.b16 %v912
        %v989 = vunpack.c.l.b16 %v913
        %v990 = vunpack.c.h.b16 %v913
        %v991 = vunpack.c.l.b16 %v914
        %v992 = vunpack.c.h.b16 %v914
        %v993 = vunpack.c.l.b16 %v915
        %v994 = vunpack.c.h.b16 %v915
        %v995 = vunpack.c.l.b16 %v916
        %v996 = vunpack.c.h.b16 %v916
        %v997 = vunpack.c.l.b16 %v917
        %v998 = vunpack.c.h.b16 %v917
        %v999 = vunpack.c.l.b16 %v918
        %v1000 = vunpack.c.h.b16 %v918
        %v1001 = vunpack.c.l.b16 %v919
        %v1002 = vunpack.c.h.b16 %v919
        %v1003 = vunpack.c.l.b16 %v920
        %v1004 = vunpack.c.h.b16 %v920
        %v1005 = vunpack.c.l.b16 %v921
        %v1006 = vunpack.c.h.b16 %v921
        %v1007 = vunpack.c.l.b16 %v922
        %v1008 = vunpack.c.h.b16 %v922
        %v1009 = vunpack.c.l.b16 %v923
        %v1010 = vunpack.c.h.b16 %v923
        %v1011 = vunpack.c.l.b16 %v924
        %v1012 = vunpack.c.h.b16 %v924
        %v1013 = vunpack.c.l.b16 %v925
        %v1014 = vunpack.c.h.b16 %v925
        %v1015 = vunpack.c.l.b16 %v926
        %v1016 = vunpack.c.h.b16 %v926
        %v1017 = vunpack.c.l.b16 %v927
        %v1018 = vunpack.c.h.b16 %v927
        %v1019 = vunpack.c.l.b16 %v928
        %v1020 = vunpack.c.h.b16 %v928
        %v1021 = vunpack.c.l.b16 %v929
        %v1022 = vunpack.c.h.b16 %v929
        %v1023 = vunpack.c.l.b16 %v930
        %v1024 = vunpack.c.h.b16 %v930
        %v1025 = vunpack.c.l.b16 %v931
        %v1026 = vunpack.c.h.b16 %v931
        %v1027 = vunpack.c.l.b16 %v932
        %v1028 = vunpack.c.h.b16 %v932
        %v1029 = vunpack.c.l.b16 %v933
        %v1030 = vunpack.c.h.b16 %v933
        %v1031 = vunpack.c.l.b16 %v934
        %v1032 = vunpack.c.h.b16 %v934
        %v1033 = vunpack.c.l.b16 %v935
        %v1034 = vunpack.c.h.b16 %v935
        %v1035 = vunpack.c.l.b16 %v936
        %v1036 = vunpack.c.h.b16 %v936
        %v1037 = vunpack.c.l.b16 %v937
        %v1038 = vunpack.c.h.b16 %v937
        %v1039 = vunpack.c.l.b16 %v938
        %v1040 = vunpack.c.h.b16 %v938
        %v1041 = vunpack.c.l.b16 %v939
        %v1042 = vunpack.c.h.b16 %v939
        %v1043 = vunpack.c.l.b16 %v940
        %v1044 = vunpack.c.h.b16 %v940
        %v1045 = vunpack.c.l.b16 %v941
        %v1046 = vunpack.c.h.b16 %v941
        %v1047 = vunpack.c.l.b16 %v942
        %v1048 = vunpack.c.h.b16 %v942
        %v1049 = vunpack.c.l.b16 %v943
        %v1050 = vunpack.c.h.b16 %v943
        %v1051 = vunpack.c.l.b16 %v944
        %v1052 = vunpack.c.h.b16 %v944
        %v1053 = vpack.c.b16 %v993, %v981
        %v1054 = vpack.c.b16 %v994, %v982
        %v1055 = vpack.c.b16 %v995, %v983
        %v1056 = vpack.c.b16 %v996, %v984
        %v1057 = vpack.c.b16 %v997, %v985
        %v1058 = vpack.c.b16 %v998, %v986
        %v1059 = vpack.c.b16 %v999, %v987
        %v1060 = vpack.c.b16 %v1000, %v988
        %v1061 = vpack.c.b16 %v1001, %v989
        %v1062 = vpack.c.b16 %v1002, %v990
        %v1063 = vpack.c.b16 %v1003, %v991
        %v1064 = vpack.c.b16 %v1004, %v992
        %v1065 = vpack.c.b16 %v1017, %v1005
        %v1066 = vpack.c.b16 %v1018, %v1006
        %v1067 = vpack.c.b16 %v1019, %v1007
        %v1068 = vpack.c.b16 %v1020, %v1008
        %v1069 = vpack.c.b16 %v1021, %v1009
        %v1070 = vpack.c.b16 %v1022, %v1010
        %v1071 = vpack.c.b16 %v1023, %v1011
        %v1072 = vpack.c.b16 %v1024, %v1012
        %v1073 = vpack.c.b16 %v1025, %v1013
        %v1074 = vpack.c.b16 %v1026, %v1014
        %v1075 = vpack.c.b16 %v1027, %v1015
        %v1076 = vpack.c.b16 %v1028, %v1016
        %v1077 = vpack.c.b16 %v1041, %v1029
        %v1078 = vpack.c.b16 %v1042, %v1030
        %v1079 = vpack.c.b16 %v1043, %v1031
        %v1080 = vpack.c.b16 %v1044, %v1032
        %v1081 = vpack.c.b16 %v1045, %v1033
        %v1082 = vpack.c.b16 %v1046, %v1034
        %v1083 = vpack.c.b16 %v1047, %v1035
        %v1084 = vpack.c.b16 %v1048, %v1036
        %v1085 = vpack.c.b16 %v1049, %v1037
        %v1086 = vpack.c.b16 %v1050, %v1038
        %v1087 = vpack.c.b16 %v1051, %v1039
        %v1088 = vpack.c.b16 %v1052, %v1040
        %v1126 = vsel %vm710, %v907, 0
        %v1129 = vsel %vm710, %v908, 0
        %1131 = vmatprep.subr.bf16.mxu0 0
        %1132 = vmatpush1.bf16.msra.mxu0 0
        %1133 = vmatprep.subr.bf16.mxu0 0
        %1134 = vmatpush1.bf16.msra.mxu0 0
        %1135 = vmatprep.subr.bf16.mxu0 0
        %1136 = vmatpush1.bf16.msra.mxu0 0
        %1137 = vmatprep.subr.bf16.mxu0 0
        %1138 = vmatpush1.bf16.msra.mxu0 0
        %1139 = vmatprep.subr.bf16.mxu0 0
        %1140 = vmatpush1.bf16.msra.mxu0 0
        %1141 = vmatprep.subr.bf16.mxu0 %v1078
        %1142 = vmatpush1.bf16.msra.mxu0 %v1077
        %1143 = vmatprep.subr.bf16.mxu0 %v1066
        %1144 = vmatpush1.bf16.msra.mxu0 %v1065
        %1145 = vmatprep.subr.bf16.mxu0 %v1054
        %1146 = vmatpush1.bf16.msra.mxu0 %v1053
        %1147 = vmatprep.subr.bf16.mxu0 0
        %1148 = vmatpush2.bf16.msra.mxu0 0
        %1149 = vmatprep.subr.bf16.mxu0 0
        %1150 = vmatpush2.bf16.msra.mxu0 0
        %1151 = vmatprep.subr.bf16.mxu0 0
        %1152 = vmatpush2.bf16.msra.mxu0 0
        %1153 = vmatprep.subr.bf16.mxu0 0
        %1154 = vmatpush2.bf16.msra.mxu0 0
        %1155 = vmatprep.subr.bf16.mxu0 0
        %1156 = vmatpush2.bf16.msra.mxu0 0
        %1157 = vmatprep.subr.bf16.mxu0 0
        %1158 = vmatpush2.bf16.msra.mxu0 0
        %1159 = vmatprep.subr.bf16.mxu0 0
        %1160 = vmatpush2.bf16.msra.mxu0 0
        %1161 = vmatprep.subr.bf16.mxu0 0
        %1162 = vmatpush2.bf16.msra.mxu0 0
        %1163 = vmatprep.mubr.bf16.mxu0 0
        %1164 = vmatmul.mubr.bf16.gmra.mxu0 %v1126
        %v1165 = vpop.f32.mrf.mxu0
        %v1166 = vadd.f32 0.0, %v1165
        %v1167 = vpop.f32.mrf.mxu0
        %v1168 = vadd.f32 0.0, %v1167
        %v1169 = vpop.f32.mrf.mxu0
        %v1170 = vadd.f32 0.0, %v1169
        %v1171 = vpop.f32.mrf.mxu0
        %v1172 = vadd.f32 0.0, %v1171
        %1173 = vmatprep.mubr.bf16.mxu0 0
        %1174 = vmatmul.mubr.bf16.gmra.mxu0 %v1129
        %v1175 = vpop.f32.mrf.mxu0
        %v1176 = vadd.f32 0.0, %v1175
        %v1177 = vpop.f32.mrf.mxu0
        %v1178 = vadd.f32 0.0, %v1177
        %v1179 = vpop.f32.mrf.mxu0
        %v1180 = vadd.f32 0.0, %v1179
        %v1181 = vpop.f32.mrf.mxu0
        %v1182 = vadd.f32 0.0, %v1181
        %1183 = vdwg.mxu0
        %1184 = vmatprep.subr.bf16.mxu0 0
        %1185 = vmatpush1.bf16.msra.mxu0 0
        %1186 = vmatprep.subr.bf16.mxu0 0
        %1187 = vmatpush1.bf16.msra.mxu0 0
        %1188 = vmatprep.subr.bf16.mxu0 0
        %1189 = vmatpush1.bf16.msra.mxu0 0
        %1190 = vmatprep.subr.bf16.mxu0 0
        %1191 = vmatpush1.bf16.msra.mxu0 0
        %1192 = vmatprep.subr.bf16.mxu0 0
        %1193 = vmatpush1.bf16.msra.mxu0 0
        %1194 = vmatprep.subr.bf16.mxu0 %v1080
        %1195 = vmatpush1.bf16.msra.mxu0 %v1079
        %1196 = vmatprep.subr.bf16.mxu0 %v1068
        %1197 = vmatpush1.bf16.msra.mxu0 %v1067
        %1198 = vmatprep.subr.bf16.mxu0 %v1056
        %1199 = vmatpush1.bf16.msra.mxu0 %v1055
        %1200 = vmatprep.subr.bf16.mxu0 0
        %1201 = vmatpush2.bf16.msra.mxu0 0
        %1202 = vmatprep.subr.bf16.mxu0 0
        %1203 = vmatpush2.bf16.msra.mxu0 0
        %1204 = vmatprep.subr.bf16.mxu0 0
        %1205 = vmatpush2.bf16.msra.mxu0 0
        %1206 = vmatprep.subr.bf16.mxu0 0
        %1207 = vmatpush2.bf16.msra.mxu0 0
        %1208 = vmatprep.subr.bf16.mxu0 0
        %1209 = vmatpush2.bf16.msra.mxu0 0
        %1210 = vmatprep.subr.bf16.mxu0 0
        %1211 = vmatpush2.bf16.msra.mxu0 0
        %1212 = vmatprep.subr.bf16.mxu0 0
        %1213 = vmatpush2.bf16.msra.mxu0 0
        %1214 = vmatprep.subr.bf16.mxu0 0
        %1215 = vmatpush2.bf16.msra.mxu0 0
        %1216 = vmatprep.mubr.bf16.mxu0 0
        %1217 = vmatmul.mubr.bf16.gmra.mxu0 %v1126
        %v1218 = vpop.f32.mrf.mxu0
        %v1219 = vadd.f32 0.0, %v1218
        %v1220 = vpop.f32.mrf.mxu0
        %v1221 = vadd.f32 0.0, %v1220
        %v1222 = vpop.f32.mrf.mxu0
        %v1223 = vadd.f32 0.0, %v1222
        %v1224 = vpop.f32.mrf.mxu0
        %v1225 = vadd.f32 0.0, %v1224
        %1226 = vmatprep.mubr.bf16.mxu0 0
        %1227 = vmatmul.mubr.bf16.gmra.mxu0 %v1129
        %v1228 = vpop.f32.mrf.mxu0
        %v1229 = vadd.f32 0.0, %v1228
        %v1230 = vpop.f32.mrf.mxu0
        %v1231 = vadd.f32 0.0, %v1230
        %v1232 = vpop.f32.mrf.mxu0
        %v1233 = vadd.f32 0.0, %v1232
        %v1234 = vpop.f32.mrf.mxu0
        %v1235 = vadd.f32 0.0, %v1234
        %1236 = vdwg.mxu0
        %1237 = vmatprep.subr.bf16.mxu0 0
        %1238 = vmatpush1.bf16.msra.mxu0 0
        %1239 = vmatprep.subr.bf16.mxu0 0
        %1240 = vmatpush1.bf16.msra.mxu0 0
        %1241 = vmatprep.subr.bf16.mxu0 0
        %1242 = vmatpush1.bf16.msra.mxu0 0
        %1243 = vmatprep.subr.bf16.mxu0 0
        %1244 = vmatpush1.bf16.msra.mxu0 0
        %1245 = vmatprep.subr.bf16.mxu0 0
        %1246 = vmatpush1.bf16.msra.mxu0 0
        %1247 = vmatprep.subr.bf16.mxu0 %v1082
        %1248 = vmatpush1.bf16.msra.mxu0 %v1081
        %1249 = vmatprep.subr.bf16.mxu0 %v1070
        %1250 = vmatpush1.bf16.msra.mxu0 %v1069
        %1251 = vmatprep.subr.bf16.mxu0 %v1058
        %1252 = vmatpush1.bf16.msra.mxu0 %v1057
        %1253 = vmatprep.subr.bf16.mxu0 0
        %1254 = vmatpush2.bf16.msra.mxu0 0
        %1255 = vmatprep.subr.bf16.mxu0 0
        %1256 = vmatpush2.bf16.msra.mxu0 0
        %1257 = vmatprep.subr.bf16.mxu0 0
        %1258 = vmatpush2.bf16.msra.mxu0 0
        %1259 = vmatprep.subr.bf16.mxu0 0
        %1260 = vmatpush2.bf16.msra.mxu0 0
        %1261 = vmatprep.subr.bf16.mxu0 0
        %1262 = vmatpush2.bf16.msra.mxu0 0
        %1263 = vmatprep.subr.bf16.mxu0 0
        %1264 = vmatpush2.bf16.msra.mxu0 0
        %1265 = vmatprep.subr.bf16.mxu0 0
        %1266 = vmatpush2.bf16.msra.mxu0 0
        %1267 = vmatprep.subr.bf16.mxu0 0
        %1268 = vmatpush2.bf16.msra.mxu0 0
        %1269 = vmatprep.mubr.bf16.mxu0 0
        %1270 = vmatmul.mubr.bf16.gmra.mxu0 %v1126
        %v1271 = vpop.f32.mrf.mxu0
        %v1272 = vadd.f32 0.0, %v1271
        %v1273 = vpop.f32.mrf.mxu0
        %v1274 = vadd.f32 0.0, %v1273
        %v1275 = vpop.f32.mrf.mxu0
        %v1276 = vadd.f32 0.0, %v1275
        %v1277 = vpop.f32.mrf.mxu0
        %v1278 = vadd.f32 0.0, %v1277
        %1279 = vmatprep.mubr.bf16.mxu0 0
        %1280 = vmatmul.mubr.bf16.gmra.mxu0 %v1129
        %v1281 = vpop.f32.mrf.mxu0
        %v1282 = vadd.f32 0.0, %v1281
        %v1283 = vpop.f32.mrf.mxu0
        %v1284 = vadd.f32 0.0, %v1283
        %v1285 = vpop.f32.mrf.mxu0
        %v1286 = vadd.f32 0.0, %v1285
        %v1287 = vpop.f32.mrf.mxu0
        %v1288 = vadd.f32 0.0, %v1287
        %1289 = vdwg.mxu0
        %1290 = vmatprep.subr.bf16.mxu0 0
        %1291 = vmatpush1.bf16.msra.mxu0 0
        %1292 = vmatprep.subr.bf16.mxu0 0
        %1293 = vmatpush1.bf16.msra.mxu0 0
        %1294 = vmatprep.subr.bf16.mxu0 0
        %1295 = vmatpush1.bf16.msra.mxu0 0
        %1296 = vmatprep.subr.bf16.mxu0 0
        %1297 = vmatpush1.bf16.msra.mxu0 0
        %1298 = vmatprep.subr.bf16.mxu0 0
        %1299 = vmatpush1.bf16.msra.mxu0 0
        %1300 = vmatprep.subr.bf16.mxu0 %v1084
        %1301 = vmatpush1.bf16.msra.mxu0 %v1083
        %1302 = vmatprep.subr.bf16.mxu0 %v1072
        %1303 = vmatpush1.bf16.msra.mxu0 %v1071
        %1304 = vmatprep.subr.bf16.mxu0 %v1060
        %1305 = vmatpush1.bf16.msra.mxu0 %v1059
        %1306 = vmatprep.subr.bf16.mxu0 0
        %1307 = vmatpush2.bf16.msra.mxu0 0
        %1308 = vmatprep.subr.bf16.mxu0 0
        %1309 = vmatpush2.bf16.msra.mxu0 0
        %1310 = vmatprep.subr.bf16.mxu0 0
        %1311 = vmatpush2.bf16.msra.mxu0 0
        %1312 = vmatprep.subr.bf16.mxu0 0
        %1313 = vmatpush2.bf16.msra.mxu0 0
        %1314 = vmatprep.subr.bf16.mxu0 0
        %1315 = vmatpush2.bf16.msra.mxu0 0
        %1316 = vmatprep.subr.bf16.mxu0 0
        %1317 = vmatpush2.bf16.msra.mxu0 0
        %1318 = vmatprep.subr.bf16.mxu0 0
        %1319 = vmatpush2.bf16.msra.mxu0 0
        %1320 = vmatprep.subr.bf16.mxu0 0
        %1321 = vmatpush2.bf16.msra.mxu0 0
        %1322 = vmatprep.mubr.bf16.mxu0 0
        %1323 = vmatmul.mubr.bf16.gmra.mxu0 %v1126
        %v1324 = vpop.f32.mrf.mxu0
        %v1325 = vadd.f32 0.0, %v1324
        %v1326 = vpop.f32.mrf.mxu0
        %v1327 = vadd.f32 0.0, %v1326
        %v1328 = vpop.f32.mrf.mxu0
        %v1329 = vadd.f32 0.0, %v1328
        %v1330 = vpop.f32.mrf.mxu0
        %v1331 = vadd.f32 0.0, %v1330
        %1332 = vmatprep.mubr.bf16.mxu0 0
        %1333 = vmatmul.mubr.bf16.gmra.mxu0 %v1129
        %v1334 = vpop.f32.mrf.mxu0
        %v1335 = vadd.f32 0.0, %v1334
        %v1336 = vpop.f32.mrf.mxu0
        %v1337 = vadd.f32 0.0, %v1336
        %v1338 = vpop.f32.mrf.mxu0
        %v1339 = vadd.f32 0.0, %v1338
        %v1340 = vpop.f32.mrf.mxu0
        %v1341 = vadd.f32 0.0, %v1340
        %1342 = vdwg.mxu0
        %1343 = vmatprep.subr.bf16.mxu0 0
        %1344 = vmatpush1.bf16.msra.mxu0 0
        %1345 = vmatprep.subr.bf16.mxu0 0
        %1346 = vmatpush1.bf16.msra.mxu0 0
        %1347 = vmatprep.subr.bf16.mxu0 0
        %1348 = vmatpush1.bf16.msra.mxu0 0
        %1349 = vmatprep.subr.bf16.mxu0 0
        %1350 = vmatpush1.bf16.msra.mxu0 0
        %1351 = vmatprep.subr.bf16.mxu0 0
        %1352 = vmatpush1.bf16.msra.mxu0 0
        %1353 = vmatprep.subr.bf16.mxu0 %v1086
        %1354 = vmatpush1.bf16.msra.mxu0 %v1085
        %1355 = vmatprep.subr.bf16.mxu0 %v1074
        %1356 = vmatpush1.bf16.msra.mxu0 %v1073
        %1357 = vmatprep.subr.bf16.mxu0 %v1062
        %1358 = vmatpush1.bf16.msra.mxu0 %v1061
        %1359 = vmatprep.subr.bf16.mxu0 0
        %1360 = vmatpush2.bf16.msra.mxu0 0
        %1361 = vmatprep.subr.bf16.mxu0 0
        %1362 = vmatpush2.bf16.msra.mxu0 0
        %1363 = vmatprep.subr.bf16.mxu0 0
        %1364 = vmatpush2.bf16.msra.mxu0 0
        %1365 = vmatprep.subr.bf16.mxu0 0
        %1366 = vmatpush2.bf16.msra.mxu0 0
        %1367 = vmatprep.subr.bf16.mxu0 0
        %1368 = vmatpush2.bf16.msra.mxu0 0
        %1369 = vmatprep.subr.bf16.mxu0 0
        %1370 = vmatpush2.bf16.msra.mxu0 0
        %1371 = vmatprep.subr.bf16.mxu0 0
        %1372 = vmatpush2.bf16.msra.mxu0 0
        %1373 = vmatprep.subr.bf16.mxu0 0
        %1374 = vmatpush2.bf16.msra.mxu0 0
        %1375 = vmatprep.mubr.bf16.mxu0 0
        %1376 = vmatmul.mubr.bf16.gmra.mxu0 %v1126
        %v1377 = vpop.f32.mrf.mxu0
        %v1378 = vadd.f32 0.0, %v1377
        %v1379 = vpop.f32.mrf.mxu0
        %v1380 = vadd.f32 0.0, %v1379
        %v1381 = vpop.f32.mrf.mxu0
        %v1382 = vadd.f32 0.0, %v1381
        %v1383 = vpop.f32.mrf.mxu0
        %v1384 = vadd.f32 0.0, %v1383
        %1385 = vmatprep.mubr.bf16.mxu0 0
        %1386 = vmatmul.mubr.bf16.gmra.mxu0 %v1129
        %v1387 = vpop.f32.mrf.mxu0
        %v1388 = vadd.f32 0.0, %v1387
        %v1389 = vpop.f32.mrf.mxu0
        %v1390 = vadd.f32 0.0, %v1389
        %v1391 = vpop.f32.mrf.mxu0
        %v1392 = vadd.f32 0.0, %v1391
        %v1393 = vpop.f32.mrf.mxu0
        %v1394 = vadd.f32 0.0, %v1393
        %1395 = vdwg.mxu0
        %1396 = vmatprep.subr.bf16.mxu0 0
        %1397 = vmatpush1.bf16.msra.mxu0 0
        %1398 = vmatprep.subr.bf16.mxu0 0
        %1399 = vmatpush1.bf16.msra.mxu0 0
        %1400 = vmatprep.subr.bf16.mxu0 0
        %1401 = vmatpush1.bf16.msra.mxu0 0
        %1402 = vmatprep.subr.bf16.mxu0 0
        %1403 = vmatpush1.bf16.msra.mxu0 0
        %1404 = vmatprep.subr.bf16.mxu0 0
        %1405 = vmatpush1.bf16.msra.mxu0 0
        %1406 = vmatprep.subr.bf16.mxu0 %v1088
        %1407 = vmatpush1.bf16.msra.mxu0 %v1087
        %1408 = vmatprep.subr.bf16.mxu0 %v1076
        %1409 = vmatpush1.bf16.msra.mxu0 %v1075
        %1410 = vmatprep.subr.bf16.mxu0 %v1064
        %1411 = vmatpush1.bf16.msra.mxu0 %v1063
        %1412 = vmatprep.subr.bf16.mxu0 0
        %1413 = vmatpush2.bf16.msra.mxu0 0
        %1414 = vmatprep.subr.bf16.mxu0 0
        %1415 = vmatpush2.bf16.msra.mxu0 0
        %1416 = vmatprep.subr.bf16.mxu0 0
        %1417 = vmatpush2.bf16.msra.mxu0 0
        %1418 = vmatprep.subr.bf16.mxu0 0
        %1419 = vmatpush2.bf16.msra.mxu0 0
        %1420 = vmatprep.subr.bf16.mxu0 0
        %1421 = vmatpush2.bf16.msra.mxu0 0
        %1422 = vmatprep.subr.bf16.mxu0 0
        %1423 = vmatpush2.bf16.msra.mxu0 0
        %1424 = vmatprep.subr.bf16.mxu0 0
        %1425 = vmatpush2.bf16.msra.mxu0 0
        %1426 = vmatprep.subr.bf16.mxu0 0
        %1427 = vmatpush2.bf16.msra.mxu0 0
        %1428 = vmatprep.mubr.bf16.mxu0 0
        %1429 = vmatmul.mubr.bf16.gmra.mxu0 %v1126
        %v1430 = vpop.f32.mrf.mxu0
        %v1431 = vadd.f32 0.0, %v1430
        %v1432 = vpop.f32.mrf.mxu0
        %v1433 = vadd.f32 0.0, %v1432
        %v1434 = vpop.f32.mrf.mxu0
        %v1435 = vadd.f32 0.0, %v1434
        %v1436 = vpop.f32.mrf.mxu0
        %v1437 = vadd.f32 0.0, %v1436
        %1438 = vmatprep.mubr.bf16.mxu0 0
        %1439 = vmatmul.mubr.bf16.gmra.mxu0 %v1129
        %v1440 = vpop.f32.mrf.mxu0
        %v1441 = vadd.f32 0.0, %v1440
        %v1442 = vpop.f32.mrf.mxu0
        %v1443 = vadd.f32 0.0, %v1442
        %v1444 = vpop.f32.mrf.mxu0
        %v1445 = vadd.f32 0.0, %v1444
        %v1446 = vpop.f32.mrf.mxu0
        %v1447 = vadd.f32 0.0, %v1446
        %1448 = vdwg.mxu0
        %v1449 = vld [vmem:[%s10] sm:$0xff]
        %v1450 = vld [vmem:[%s10 + $0x8] sm:$0xff]
        %v1451 = vld [vmem:[%s10 + $0x10] sm:$0xff]
        %v1452 = vld [vmem:[%s10 + $0x18] sm:$0xff]
        %1454 = vset.pattern.permute.xlu0 0
        %1455 = vperm.xlu0 %1454, %v1449
        %v1456 = vpop.permute.xlu0 %1455
        %1459 = vset.pattern.permute.xlu0 0
        %1460 = vperm.xlu0 %1459, %v1450
        %v1461 = vpop.permute.xlu0 %1460
        %1464 = vset.pattern.permute.xlu0 0
        %1465 = vperm.xlu0 %1464, %v1451
        %v1466 = vpop.permute.xlu0 %1465
        %1469 = vset.pattern.permute.xlu0 0
        %1470 = vperm.xlu0 %1469, %v1452
        %v1471 = vpop.permute.xlu0 %1470
        %v1473 = vadd.f32 %v1166, %v1456
        %v1474 = vadd.f32 %v1168, %v1456
        %v1475 = vadd.f32 %v1219, %v1456
        %v1476 = vadd.f32 %v1221, %v1456
        %v1477 = vadd.f32 %v1272, %v1456
        %v1478 = vadd.f32 %v1274, %v1456
        %v1479 = vadd.f32 %v1325, %v1456
        %v1480 = vadd.f32 %v1327, %v1456
        %v1481 = vadd.f32 %v1170, %v1461
        %v1482 = vadd.f32 %v1172, %v1461
        %v1483 = vadd.f32 %v1223, %v1461
        %v1484 = vadd.f32 %v1225, %v1461
        %v1485 = vadd.f32 %v1276, %v1461
        %v1486 = vadd.f32 %v1278, %v1461
        %v1487 = vadd.f32 %v1329, %v1461
        %v1488 = vadd.f32 %v1331, %v1461
        %v1489 = vadd.f32 %v1176, %v1466
        %v1490 = vadd.f32 %v1178, %v1466
        %v1491 = vadd.f32 %v1229, %v1466
        %v1492 = vadd.f32 %v1231, %v1466
        %v1493 = vadd.f32 %v1282, %v1466
        %v1494 = vadd.f32 %v1284, %v1466
        %v1495 = vadd.f32 %v1335, %v1466
        %v1496 = vadd.f32 %v1337, %v1466
        %v1497 = vadd.f32 %v1180, %v1471
        %v1498 = vadd.f32 %v1182, %v1471
        %v1499 = vadd.f32 %v1233, %v1471
        %v1500 = vadd.f32 %v1235, %v1471
        %v1501 = vadd.f32 %v1286, %v1471
        %v1502 = vadd.f32 %v1288, %v1471
        %v1503 = vadd.f32 %v1339, %v1471
        %v1504 = vadd.f32 %v1341, %v1471
        %v1505 = vld [vmem:[%s433] sm:$0xff]
        %v1506 = vld [vmem:[%s433 + $0x8] sm:$0xff]
        %v1507 = vld [vmem:[%s433 + $0x10] sm:$0xff]
        %v1508 = vld [vmem:[%s433 + $0x18] sm:$0xff]
        %v1509 = vld [vmem:[%s433 + $0x20] sm:$0xff]
        %v1510 = vld [vmem:[%s433 + $0x28] sm:$0xff]
        %v1511 = vld [vmem:[%s433 + $0x30] sm:$0xff]
        %v1512 = vld [vmem:[%s433 + $0x38] sm:$0xff]
        %v1513 = vld [vmem:[%s433 + $0x40] sm:$0xff]
        %v1514 = vld [vmem:[%s433 + $0x48] sm:$0xff]
        %v1515 = vld [vmem:[%s433 + $0x50] sm:$0xff]
        %v1516 = vld [vmem:[%s433 + $0x58] sm:$0xff]
        %v1517 = vld [vmem:[%s433 + $0x60] sm:$0xff]
        %v1518 = vld [vmem:[%s433 + $0x68] sm:$0xff]
        %v1519 = vld [vmem:[%s433 + $0x70] sm:$0xff]
        %v1520 = vld [vmem:[%s433 + $0x78] sm:$0xff]
        %v1521 = vld [vmem:[%s433 + $0x80] sm:$0xff]
        %v1522 = vld [vmem:[%s433 + $0x88] sm:$0xff]
        %v1523 = vld [vmem:[%s433 + $0x90] sm:$0xff]
        %v1524 = vld [vmem:[%s433 + $0x98] sm:$0xff]
        %v1525 = vld [vmem:[%s433 + $0xa0] sm:$0xff]
        %v1526 = vld [vmem:[%s433 + $0xa8] sm:$0xff]
        %v1527 = vld [vmem:[%s433 + $0xb0] sm:$0xff]
        %v1528 = vld [vmem:[%s433 + $0xb8] sm:$0xff]
        %v1529 = vld [vmem:[%s433 + $0xc0] sm:$0xff]
        %v1530 = vld [vmem:[%s433 + $0xc8] sm:$0xff]
        %v1531 = vld [vmem:[%s433 + $0xd0] sm:$0xff]
        %v1532 = vld [vmem:[%s433 + $0xd8] sm:$0xff]
        %v1533 = vld [vmem:[%s433 + $0xe0] sm:$0xff]
        %v1534 = vld [vmem:[%s433 + $0xe8] sm:$0xff]
        %v1535 = vld [vmem:[%s433 + $0xf0] sm:$0xff]
        %v1536 = vld [vmem:[%s433 + $0xf8] sm:$0xff]
        %v1537 = vadd.f32 %v1473, %v1505
        %v1538 = vadd.f32 %v1474, %v1506
        %v1539 = vadd.f32 %v1475, %v1507
        %v1540 = vadd.f32 %v1476, %v1508
        %v1541 = vadd.f32 %v1477, %v1509
        %v1542 = vadd.f32 %v1478, %v1510
        %v1543 = vadd.f32 %v1479, %v1511
        %v1544 = vadd.f32 %v1480, %v1512
        %v1545 = vadd.f32 %v1481, %v1513
        %v1546 = vadd.f32 %v1482, %v1514
        %v1547 = vadd.f32 %v1483, %v1515
        %v1548 = vadd.f32 %v1484, %v1516
        %v1549 = vadd.f32 %v1485, %v1517
        %v1550 = vadd.f32 %v1486, %v1518
        %v1551 = vadd.f32 %v1487, %v1519
        %v1552 = vadd.f32 %v1488, %v1520
        %v1553 = vadd.f32 %v1489, %v1521
        %v1554 = vadd.f32 %v1490, %v1522
        %v1555 = vadd.f32 %v1491, %v1523
        %v1556 = vadd.f32 %v1492, %v1524
        %v1557 = vadd.f32 %v1493, %v1525
        %v1558 = vadd.f32 %v1494, %v1526
        %v1559 = vadd.f32 %v1495, %v1527
        %v1560 = vadd.f32 %v1496, %v1528
        %v1561 = vadd.f32 %v1497, %v1529
        %v1562 = vadd.f32 %v1498, %v1530
        %v1563 = vadd.f32 %v1499, %v1531
        %v1564 = vadd.f32 %v1500, %v1532
        %v1565 = vadd.f32 %v1501, %v1533
        %v1566 = vadd.f32 %v1502, %v1534
        %v1567 = vadd.f32 %v1503, %v1535
        %v1568 = vadd.f32 %v1504, %v1536
        %1569 = vst [vmem:[%s490] sm:$0xff] %v1537
        %1570 = vst [vmem:[%s490 + $0x8] sm:$0xff] %v1538
        %1571 = vst [vmem:[%s490 + $0x10] sm:$0xff] %v1539
        %1572 = vst [vmem:[%s490 + $0x18] sm:$0xff] %v1540
        %1573 = vst [vmem:[%s490 + $0x20] sm:$0xff] %v1541
        %1574 = vst [vmem:[%s490 + $0x28] sm:$0xff] %v1542
        %1575 = vst [vmem:[%s490 + $0x30] sm:$0xff] %v1543
        %1576 = vst [vmem:[%s490 + $0x38] sm:$0xff] %v1544
        %1577 = vst [vmem:[%s490 + $0x40] sm:$0xff] %v1545
        %1578 = vst [vmem:[%s490 + $0x48] sm:$0xff] %v1546
        %1579 = vst [vmem:[%s490 + $0x50] sm:$0xff] %v1547
        %1580 = vst [vmem:[%s490 + $0x58] sm:$0xff] %v1548
        %1581 = vst [vmem:[%s490 + $0x60] sm:$0xff] %v1549
        %1582 = vst [vmem:[%s490 + $0x68] sm:$0xff] %v1550
        %1583 = vst [vmem:[%s490 + $0x70] sm:$0xff] %v1551
        %1584 = vst [vmem:[%s490 + $0x78] sm:$0xff] %v1552
        %1585 = vst [vmem:[%s490 + $0x80] sm:$0xff] %v1553
        %1586 = vst [vmem:[%s490 + $0x88] sm:$0xff] %v1554
        %1587 = vst [vmem:[%s490 + $0x90] sm:$0xff] %v1555
        %1588 = vst [vmem:[%s490 + $0x98] sm:$0xff] %v1556
        %1589 = vst [vmem:[%s490 + $0xa0] sm:$0xff] %v1557
        %1590 = vst [vmem:[%s490 + $0xa8] sm:$0xff] %v1558
        %1591 = vst [vmem:[%s490 + $0xb0] sm:$0xff] %v1559
        %1592 = vst [vmem:[%s490 + $0xb8] sm:$0xff] %v1560
        %1593 = vst [vmem:[%s490 + $0xc0] sm:$0xff] %v1561
        %1594 = vst [vmem:[%s490 + $0xc8] sm:$0xff] %v1562
        %1595 = vst [vmem:[%s490 + $0xd0] sm:$0xff] %v1563
        %1596 = vst [vmem:[%s490 + $0xd8] sm:$0xff] %v1564
        %1597 = vst [vmem:[%s490 + $0xe0] sm:$0xff] %v1565
        %1598 = vst [vmem:[%s490 + $0xe8] sm:$0xff] %v1566
        %1599 = vst [vmem:[%s490 + $0xf0] sm:$0xff] %v1567
        %1600 = vst [vmem:[%s490 + $0xf8] sm:$0xff] %v1568
        %v1601 = vadd.f32 %v1378, %v1456
        %v1602 = vadd.f32 %v1380, %v1456
        %v1603 = vadd.f32 %v1431, %v1456
        %v1604 = vadd.f32 %v1433, %v1456
        %v1605 = vadd.f32 %v1382, %v1461
        %v1606 = vadd.f32 %v1384, %v1461
        %v1607 = vadd.f32 %v1435, %v1461
        %v1608 = vadd.f32 %v1437, %v1461
        %v1609 = vadd.f32 %v1388, %v1466
        %v1610 = vadd.f32 %v1390, %v1466
        %v1611 = vadd.f32 %v1441, %v1466
        %v1612 = vadd.f32 %v1443, %v1466
        %v1613 = vadd.f32 %v1392, %v1471
        %v1614 = vadd.f32 %v1394, %v1471
        %v1615 = vadd.f32 %v1445, %v1471
        %v1616 = vadd.f32 %v1447, %v1471
        %v1617 = vld [vmem:[%s442] sm:$0xff]
        %v1618 = vld [vmem:[%s442 + $0x8] sm:$0xff]
        %v1619 = vld [vmem:[%s442 + $0x10] sm:$0xff]
        %v1620 = vld [vmem:[%s442 + $0x18] sm:$0xff]
        %v1621 = vld [vmem:[%s442 + $0x20] sm:$0xff]
        %v1622 = vld [vmem:[%s442 + $0x28] sm:$0xff]
        %v1623 = vld [vmem:[%s442 + $0x30] sm:$0xff]
        %v1624 = vld [vmem:[%s442 + $0x38] sm:$0xff]
        %v1625 = vld [vmem:[%s442 + $0x40] sm:$0xff]
        %v1626 = vld [vmem:[%s442 + $0x48] sm:$0xff]
        %v1627 = vld [vmem:[%s442 + $0x50] sm:$0xff]
        %v1628 = vld [vmem:[%s442 + $0x58] sm:$0xff]
        %v1629 = vld [vmem:[%s442 + $0x60] sm:$0xff]
        %v1630 = vld [vmem:[%s442 + $0x68] sm:$0xff]
        %v1631 = vld [vmem:[%s442 + $0x70] sm:$0xff]
        %v1632 = vld [vmem:[%s442 + $0x78] sm:$0xff]
        %v1633 = vadd.f32 %v1601, %v1617
        %v1634 = vadd.f32 %v1602, %v1618
        %v1635 = vadd.f32 %v1603, %v1619
        %v1636 = vadd.f32 %v1604, %v1620
        %v1637 = vadd.f32 %v1605, %v1621
        %v1638 = vadd.f32 %v1606, %v1622
        %v1639 = vadd.f32 %v1607, %v1623
        %v1640 = vadd.f32 %v1608, %v1624
        %v1641 = vadd.f32 %v1609, %v1625
        %v1642 = vadd.f32 %v1610, %v1626
        %v1643 = vadd.f32 %v1611, %v1627
        %v1644 = vadd.f32 %v1612, %v1628
        %v1645 = vadd.f32 %v1613, %v1629
        %v1646 = vadd.f32 %v1614, %v1630
        %v1647 = vadd.f32 %v1615, %v1631
        %v1648 = vadd.f32 %v1616, %v1632
        %1649 = vst [vmem:[%s497] sm:$0xff] %v1633
        %1650 = vst [vmem:[%s497 + $0x8] sm:$0xff] %v1634
        %1651 = vst [vmem:[%s497 + $0x10] sm:$0xff] %v1635
        %1652 = vst [vmem:[%s497 + $0x18] sm:$0xff] %v1636
        %1653 = vst [vmem:[%s497 + $0x20] sm:$0xff] %v1637
        %1654 = vst [vmem:[%s497 + $0x28] sm:$0xff] %v1638
        %1655 = vst [vmem:[%s497 + $0x30] sm:$0xff] %v1639
        %1656 = vst [vmem:[%s497 + $0x38] sm:$0xff] %v1640
        %1657 = vst [vmem:[%s497 + $0x40] sm:$0xff] %v1641
        %1658 = vst [vmem:[%s497 + $0x48] sm:$0xff] %v1642
        %1659 = vst [vmem:[%s497 + $0x50] sm:$0xff] %v1643
        %1660 = vst [vmem:[%s497 + $0x58] sm:$0xff] %v1644
        %1661 = vst [vmem:[%s497 + $0x60] sm:$0xff] %v1645
        %1662 = vst [vmem:[%s497 + $0x68] sm:$0xff] %v1646
        %1663 = vst [vmem:[%s497 + $0x70] sm:$0xff] %v1647
        %1664 = vst [vmem:[%s497 + $0x78] sm:$0xff] %v1648
        %s1665 = sand.u32 %s290, 1
        %s1666 = scalar_lea.sflag [#allocation4], %s1665
        %s1667 = sand.u32 %s290, 1
        %s1668 = smul.addr %s1667, 256
        %s1669 = scalar_lea.vmem [#allocation7], %s1668
        %s1670 = sand.u32 %s316, 1
        %s1671 = scalar_lea.sflag [#allocation9], %s1670
        %s1672 = sand.u32 %s316, 1
        %s1673 = smul.addr %s1672, 128
        %s1674 = scalar_lea.vmem [#allocation8], %s1673
        // Predicated region
        $region73: #{tpu_custom_call.1} parent=63 // pred_check
          %p1675 = pneg %p300
        $region74: #{tpu_custom_call.1} parent=63 // pred_check_branch
          %1677 = sbr.rel (%p1675) target = $region76
        $region75: #{tpu_custom_call.1} parent=63 // pred_region
          %s1679 = ssub.s32 4096, 4096
          %1680 = vsyncadd %s1666, %s1679
          %s1681 = smul.addr %s36, 32
          %s1682 = smul.addr %s1681, 128
          %s1683 = scalar_lea.hbm %s11, %s1682
          %s1684 = sshll.u32 %s1669, 4
          %s1685 = int_to_ptr.vmem [resolvable:$true] %s1684
          %1690 = dma.vmem_to_hbm [thread:$0]  %s1685, 4096, %s1683, %s1666, 1024, 1024, 64
        $region76: #{tpu_custom_call.1} parent=63 // pred_fallthru
          _
        // Predicated region
        $region77: #{tpu_custom_call.1} parent=63 // pred_check
          %p1691 = pneg %p326
        $region78: #{tpu_custom_call.1} parent=63 // pred_check_branch
          %1693 = sbr.rel (%p1691) target = $region80
        $region79: #{tpu_custom_call.1} parent=63 // pred_region
          %s1695 = ssub.s32 2048, 2048
          %1696 = vsyncadd %s1671, %s1695
          %s1697 = smul.addr %s36, 16
          %s1698 = smul.addr %s1697, 128
          %s1699 = scalar_lea.hbm %s12, %s1698
          %s1700 = sshll.u32 %s1674, 4
          %s1701 = int_to_ptr.vmem [resolvable:$true] %s1700
          %1706 = dma.vmem_to_hbm [thread:$0]  %s1701, 2048, %s1699, %s1671, 512, 512, 32
        $region80: #{tpu_custom_call.1} parent=63 // pred_fallthru
          _
      $region64: #{tpu_custom_call.1} parent=5 // pred_fallthru
        _
      %p1707 = scmp.le.s32.totalorder 2, %s31
      // Predicated region
      $region81: #{tpu_custom_call.1} parent=5 // pred_check
        %p1708 = pneg %p1707
      $region82: #{tpu_custom_call.1} parent=5 // pred_check_branch
        %1710 = sbr.rel (%p1708) target = $region84
      $region83: #{tpu_custom_call.1} parent=5 // pred_region
        %s1711 = ssub.s32 %s31, 2
        // Predicated region
        $region85: #{tpu_custom_call.1} parent=83 // pred_check
          %p1712 = pneg %p306
        $region86: #{tpu_custom_call.1} parent=83 // pred_check_branch
          %1714 = sbr.rel (%p1712) target = $region88
        $region87: #{tpu_custom_call.1} parent=83 // pred_region
          %s1715 = sand.u32 %s291, 1
          %s1716 = scalar_lea.sflag [#allocation4], %s1715
          %s1717 = sand.u32 %s291, 1
          %s1718 = smul.addr %s1717, 256
          %s1719 = scalar_lea.vmem [#allocation7], %s1718
          %1720 = dma.done %s1716, 4096
        $region88: #{tpu_custom_call.1} parent=83 // pred_fallthru
          _
        // Predicated region
        $region89: #{tpu_custom_call.1} parent=83 // pred_check
          %p1721 = pneg %p332
        $region90: #{tpu_custom_call.1} parent=83 // pred_check_branch
          %1723 = sbr.rel (%p1721) target = $region92
        $region91: #{tpu_custom_call.1} parent=83 // pred_region
          %s1724 = sand.u32 %s317, 1
          %s1725 = scalar_lea.sflag [#allocation9], %s1724
          %s1726 = sand.u32 %s317, 1
          %s1727 = smul.addr %s1726, 128
          %s1728 = scalar_lea.vmem [#allocation8], %s1727
          %1729 = dma.done %s1725, 2048
        $region92: #{tpu_custom_call.1} parent=83 // pred_fallthru
          _
      $region84: #{tpu_custom_call.1} parent=5 // pred_fallthru
        _
    $region6: #{tpu_custom_call.1} parent=1 // loop_footer
      %s35 = sadd.s32 1, %s31
    $region7: #{tpu_custom_call.1} parent=1 // loop_footer_branch
      %30 = sbr.rel target = $region3
    $region8: #{tpu_custom_call.1} parent=1 // loop_exit
      _
    %1730 = vsyncpa [#allocation3], 1
    %s1731 = scalar_lea.sflag [#allocation3], 1
    %1732 = vsyncpa %s1731, 1
    %1733 = vsyncpa [#allocation6], 1
    %s1734 = scalar_lea.sflag [#allocation6], 1
    %1735 = vsyncpa %s1734, 1
    %1736 = vsyncpa [#allocation4], 1
    %s1737 = scalar_lea.sflag [#allocation4], 1
    %1738 = vsyncpa %s1737, 1
    %1739 = vsyncpa [#allocation9], 1
    %s1740 = scalar_lea.sflag [#allocation9], 1
    %1741 = vsyncpa %s1740, 1

</llo_original>
